<compile_context>
chip_gen: v5e
topology: v5e:2x2
jax: 0.10.0
libtpu: 0.0.40
codegen_flags: <defaults>
</compile_context>

<pallas_src>
import functools

import jax
import jax.numpy as jnp
import numpy as np
from jax import lax
from jax.experimental import pallas as pl
from jax.experimental.pallas import tpu as pltpu

LN_EPS = 1e-5  # F.layer_norm default


# ----------------------------- in-kernel math -----------------------------

def _layer_norm(x, gamma):
    # F.layer_norm over last dim, beta == 0 buffer.
    mean = jnp.mean(x, axis=-1, keepdims=True)
    var = jnp.mean((x - mean) ** 2, axis=-1, keepdims=True)
    return (x - mean) * lax.rsqrt(var + LN_EPS) * gamma


def _gelu_tanh(x):
    # tanh-approximate GELU: transcendental goes to the EUP slot.
    c = 0.7978845608028654  # sqrt(2/pi)
    return 0.5 * x * (1.0 + jnp.tanh(c * (x + 0.044715 * (x * x * x))))


# ----------------------------- fused transformer kernel -----------------------------

def transformer_kernel(x_ref,
                       attn_g_ref, wq_ref, wkv_ref, wo_ref,
                       ff_g_ref, w1_ref, b1_ref, w2_ref, b2_ref,
                       o_ref, head_scratch,
                       *, batch, seq, heads, dim_head, scale):
    layer = pl.program_id(0)

    # The residual stream is carried in the (resident) output block.
    @pl.when(layer == 0)
    def _():
        o_ref[...] = x_ref[...]

    x = o_ref[...]                                    # (B*N, D) f32

    # ---------------- attention ----------------
    xn = _layer_norm(x, attn_g_ref[0])                # norm applies to queries only
    q = jnp.dot(xn.astype(jnp.bfloat16), wq_ref[0],
                preferred_element_type=jnp.float32) * scale        # (B*N, H*Dh)
    kv = jnp.dot(x.astype(jnp.bfloat16), wkv_ref[0],
                 preferred_element_type=jnp.float32)                # (B*N, 2*Dh)
    # k/v shared across heads (multi-query).  Reshapes only split the leading
    # (sublane) dim, done in f32 so they are layout no-ops.
    k = kv[:, :dim_head].reshape(batch, seq, dim_head).astype(jnp.bfloat16)
    v = kv[:, dim_head:].reshape(batch, seq, dim_head).astype(jnp.bfloat16)

    for h in range(heads):                            # static, tiny (H=4)
        qh = q[:, h * dim_head:(h + 1) * dim_head]
        qh = qh.reshape(batch, seq, dim_head).astype(jnp.bfloat16)
        sim = jnp.einsum('bid,bjd->bij', qh, k,
                         preferred_element_type=jnp.float32)        # (B, N, N)
        sim = sim - jnp.max(sim, axis=-1, keepdims=True)
        p = jnp.exp(sim)
        p = p * pl.reciprocal(jnp.sum(p, axis=-1, keepdims=True), approx=True)
        oh = jnp.einsum('bij,bjd->bid', p.astype(jnp.bfloat16), v,
                        preferred_element_type=jnp.float32)         # (B, N, Dh)
        head_scratch[:, h * dim_head:(h + 1) * dim_head] = (
            oh.reshape(batch * seq, dim_head))

    y = jnp.dot(head_scratch[...].astype(jnp.bfloat16), wo_ref[0],
                preferred_element_type=jnp.float32)                 # (B*N, D)
    x = x + y                                          # residual add

    # ---------------- feed-forward ----------------
    xn = _layer_norm(x, ff_g_ref[0])
    hdn = jnp.dot(xn.astype(jnp.bfloat16), w1_ref[0],
                  preferred_element_type=jnp.float32) + b1_ref[0]
    hdn = _gelu_tanh(hdn)
    x = x + jnp.dot(hdn.astype(jnp.bfloat16), w2_ref[0],
                    preferred_element_type=jnp.float32) + b2_ref[0]

    o_ref[...] = x


def transformer_forward(x, params, heads, dim_head):
    B, N, D = x.shape
    depth = params["wq"].shape[0]
    inner = heads * dim_head
    dff = params["w1"].shape[-1]

    x2 = x.reshape(B * N, D).astype(jnp.float32)

    # bf16 at the kernel boundary for MXU operands; gammas/biases stay f32.
    wq = params["wq"].astype(jnp.bfloat16)
    wkv = params["wkv"].astype(jnp.bfloat16)
    wo = params["wo"].astype(jnp.bfloat16)
    w1 = params["w1"].astype(jnp.bfloat16)
    w2 = params["w2"].astype(jnp.bfloat16)
    g_attn = params["attn_gamma"][:, None, :]          # (depth, 1, D)
    g_ff = params["ff_gamma"][:, None, :]
    b1 = params["b1"][:, None, :]                       # (depth, 1, Dff)
    b2 = params["b2"][:, None, :]                       # (depth, 1, D)

    kernel = functools.partial(transformer_kernel, batch=B, seq=N, heads=heads,
                               dim_head=dim_head, scale=dim_head ** -0.5)

    out = pl.pallas_call(
        kernel,
        out_shape=jax.ShapeDtypeStruct((B * N, D), jnp.float32),
        grid_spec=pltpu.PrefetchScalarGridSpec(
            num_scalar_prefetch=0,
            grid=(depth,),
            in_specs=[
                pl.BlockSpec((B * N, D), lambda d: (0, 0)),            # x (resident)
                pl.BlockSpec((1, 1, D), lambda d: (d, 0, 0)),          # attn gamma
                pl.BlockSpec((1, D, inner), lambda d: (d, 0, 0)),      # wq
                pl.BlockSpec((1, D, 2 * dim_head), lambda d: (d, 0, 0)),  # wkv
                pl.BlockSpec((1, inner, D), lambda d: (d, 0, 0)),      # wo
                pl.BlockSpec((1, 1, D), lambda d: (d, 0, 0)),          # ff gamma
                pl.BlockSpec((1, D, dff), lambda d: (d, 0, 0)),        # w1
                pl.BlockSpec((1, 1, dff), lambda d: (d, 0, 0)),        # b1
                pl.BlockSpec((1, dff, D), lambda d: (d, 0, 0)),        # w2
                pl.BlockSpec((1, 1, D), lambda d: (d, 0, 0)),          # b2
            ],
            out_specs=pl.BlockSpec((B * N, D), lambda d: (0, 0)),      # resident carry
            scratch_shapes=[pltpu.VMEM((B * N, inner), jnp.float32)],
        ),
        compiler_params=pltpu.CompilerParams(
            dimension_semantics=("arbitrary",)),
    )(x2, g_attn, wq, wkv, wo, g_ff, w1, b1, w2, b2)

    return out.reshape(B, N, D).astype(x.dtype)


# ----------------------------- params -----------------------------

def init_params(key, dim, depth, heads, dim_head, ff_mult=4):
    inner = heads * dim_head
    dff = int(dim * ff_mult)

    def layer(k):
        ks = jax.random.split(k, 6)
        return dict(
            attn_gamma=jnp.ones((dim,), jnp.float32),
            wq=jax.random.normal(ks[0], (dim, inner), jnp.float32) * 0.05,
            wkv=jax.random.normal(ks[1], (dim, 2 * dim_head), jnp.float32) * 0.05,
            wo=jax.random.normal(ks[2], (inner, dim), jnp.float32) * 0.05,
            ff_gamma=jnp.ones((dim,), jnp.float32),
            w1=jax.random.normal(ks[3], (dim, dff), jnp.float32) * 0.05,
            b1=jax.random.normal(ks[4], (dff,), jnp.float32) * 0.01,
            w2=jax.random.normal(ks[5], (dff, dim), jnp.float32) * 0.05,
            b2=jnp.zeros((dim,), jnp.float32),
        )

    layers = [layer(jax.random.fold_in(key, i)) for i in range(depth)]
    return {name: jnp.stack([l[name] for l in layers]) for name in layers[0]}


# ----------------------------- pure-JAX reference -----------------------------

def reference_forward(x, params, heads, dim_head):
    scale = dim_head ** -0.5
    hp = lax.Precision.HIGHEST
    depth = params["wq"].shape[0]
    B, N, D = x.shape
    for l in range(depth):
        xin = x
        xn = _layer_norm(xin, params["attn_gamma"][l])
        q = jnp.matmul(xn, params["wq"][l], precision=hp)
        kv = jnp.matmul(xin, params["wkv"][l], precision=hp)
        k, v = kv[..., :dim_head], kv[..., dim_head:]
        q = q.reshape(B, N, heads, dim_head).transpose(0, 2, 1, 3) * scale
        sim = jnp.einsum("bhid,bjd->bhij", q, k, precision=hp)
        attn = jax.nn.softmax(sim, axis=-1)
        o = jnp.einsum("bhij,bjd->bhid", attn, v, precision=hp)
        o = o.transpose(0, 2, 1, 3).reshape(B, N, heads * dim_head)
        x = jnp.matmul(o, params["wo"][l], precision=hp) + xin

        xin = x
        xn = _layer_norm(xin, params["ff_gamma"][l])
        h = jax.nn.gelu(jnp.matmul(xn, params["w1"][l], precision=hp) + params["b1"][l],
                        approximate=False)
        x = jnp.matmul(h, params["w2"][l], precision=hp) + params["b2"][l] + xin
    return x


# ----------------------------- main -----------------------------

if __name__ == "__main__":
    B, N, DIM = 2, 8, 32
    HEADS, DIM_HEAD, DEPTH = 4, 8, 2

    key = jax.random.PRNGKey(0)
    kx, kp = jax.random.split(key)
    x = jax.random.normal(kx, (B, N, DIM), jnp.float32)
    params = init_params(kp, DIM, DEPTH, HEADS, DIM_HEAD)

    out = jax.block_until_ready(transformer_forward(x, params, HEADS, DIM_HEAD))
    ref = jax.block_until_ready(reference_forward(x, params, HEADS, DIM_HEAD))

    assert out.shape == (B, N, DIM)
    err = float(np.max(np.abs(np.asarray(out) - np.asarray(ref))))
    assert np.allclose(np.asarray(out), np.asarray(ref), rtol=3e-2, atol=3e-2), err
    print("KERNEL_OK")
</pallas_src>

<mosaic_0001>
module attributes {stable_mosaic.version = 11 : i64} {
  func.func @transformer_kernel(%arg0: i32, %arg1: memref<16x32xf32, #tpu.memory_space<vmem>>, %arg2: memref<1x1x32xf32, #tpu.memory_space<vmem>>, %arg3: memref<1x32x32xbf16, #tpu.memory_space<vmem>>, %arg4: memref<1x32x16xbf16, #tpu.memory_space<vmem>>, %arg5: memref<1x32x32xbf16, #tpu.memory_space<vmem>>, %arg6: memref<1x1x32xf32, #tpu.memory_space<vmem>>, %arg7: memref<1x32x128xbf16, #tpu.memory_space<vmem>>, %arg8: memref<1x1x128xf32, #tpu.memory_space<vmem>>, %arg9: memref<1x128x32xbf16, #tpu.memory_space<vmem>>, %arg10: memref<1x1x32xf32, #tpu.memory_space<vmem>>, %arg11: memref<16x32xf32, #tpu.memory_space<vmem>>, %arg12: memref<16x32xf32, #tpu.memory_space<vmem>>) attributes {dimension_semantics = [#tpu.dimension_semantics<arbitrary>], iteration_bounds = array<i64: 2>, scalar_prefetch = 0 : i64, scratch_operands = 1 : i64, tpu.core_type = #tpu.core_type<tc>, window_params = [{pipeline_mode = #tpu.pipeline_mode<synchronous>, transform_indices = @transform_0, window_bounds = array<i64: 16, 32>}, {transform_indices = @transform_1, window_bounds = array<i64: 1, 1, 32>}, {transform_indices = @transform_2, window_bounds = array<i64: 1, 32, 32>}, {transform_indices = @transform_3, window_bounds = array<i64: 1, 32, 16>}, {transform_indices = @transform_4, window_bounds = array<i64: 1, 32, 32>}, {transform_indices = @transform_5, window_bounds = array<i64: 1, 1, 32>}, {transform_indices = @transform_6, window_bounds = array<i64: 1, 32, 128>}, {transform_indices = @transform_7, window_bounds = array<i64: 1, 1, 128>}, {transform_indices = @transform_8, window_bounds = array<i64: 1, 128, 32>}, {transform_indices = @transform_9, window_bounds = array<i64: 1, 1, 32>}, {pipeline_mode = #tpu.pipeline_mode<synchronous>, transform_indices = @transform_10, window_bounds = array<i64: 16, 32>}]} {
    %c0_i32 = arith.constant 0 : i32
    %0 = arith.cmpi eq, %arg0, %c0_i32 : i32
    %1 = arith.extui %0 : i1 to i32
    %c0_i32_0 = arith.constant 0 : i32
    %2 = arith.cmpi ne, %1, %c0_i32_0 : i32
    scf.if %2 {
      %c0_73 = arith.constant 0 : index
      %c0_74 = arith.constant 0 : index
      %173 = vector.load %arg1[%c0_73, %c0_74] : memref<16x32xf32, #tpu.memory_space<vmem>>, vector<16x32xf32>
      %c0_75 = arith.constant 0 : index
      %c0_76 = arith.constant 0 : index
      %174 = vector.load %arg11[%c0_75, %c0_76] : memref<16x32xf32, #tpu.memory_space<vmem>>, vector<16x32xf32>
      tpu.vector_store %arg11[%c0_75, %c0_76], %173 {strides = array<i32>} : memref<16x32xf32, #tpu.memory_space<vmem>>, vector<16x32xf32>,
    } else {
    }
    %c0 = arith.constant 0 : index
    %c0_1 = arith.constant 0 : index
    %3 = vector.load %arg11[%c0, %c0_1] : memref<16x32xf32, #tpu.memory_space<vmem>>, vector<16x32xf32>
    %c0_2 = arith.constant 0 : index
    %c0_3 = arith.constant 0 : index
    %c0_4 = arith.constant 0 : index
    %4 = vector.load %arg2[%c0_2, %c0_3, %c0_4] : memref<1x1x32xf32, #tpu.memory_space<vmem>>, vector<1x1x32xf32>
    %5 = vector.shape_cast %4 : vector<1x1x32xf32> to vector<1x32xf32>
    %cst = arith.constant dense<0.000000e+00> : vector<16xf32>
    %6 = vector.multi_reduction <add>, %3, %cst [1] : vector<16x32xf32> to vector<16xf32>
    %7 = vector.shape_cast %6 : vector<16xf32> to vector<16x1xf32>
    %cst_5 = arith.constant 3.200000e+01 : f32
    %8 = vector.broadcast %cst_5 : f32 to vector<16x1xf32>
    %9 = arith.divf %7, %8 : vector<16x1xf32>
    %10 = vector.broadcast %9 : vector<16x1xf32> to vector<16x32xf32>
    %11 = arith.subf %3, %10 : vector<16x32xf32>
    %12 = arith.mulf %11, %11 : vector<16x32xf32>
    %cst_6 = arith.constant dense<0.000000e+00> : vector<16xf32>
    %13 = vector.multi_reduction <add>, %12, %cst_6 [1] : vector<16x32xf32> to vector<16xf32>
    %14 = vector.shape_cast %13 : vector<16xf32> to vector<16x1xf32>
    %cst_7 = arith.constant 3.200000e+01 : f32
    %15 = vector.broadcast %cst_7 : f32 to vector<16x1xf32>
    %16 = arith.divf %14, %15 : vector<16x1xf32>
    %17 = vector.broadcast %9 : vector<16x1xf32> to vector<16x32xf32>
    %18 = arith.subf %3, %17 : vector<16x32xf32>
    %cst_8 = arith.constant 9.99999974E-6 : f32
    %19 = vector.broadcast %cst_8 : f32 to vector<16x1xf32>
    %20 = arith.addf %16, %19 : vector<16x1xf32>
    %21 = math.rsqrt %20 : vector<16x1xf32>
    %22 = vector.broadcast %21 : vector<16x1xf32> to vector<16x32xf32>
    %23 = arith.mulf %18, %22 : vector<16x32xf32>
    %24 = vector.broadcast %5 : vector<1x32xf32> to vector<16x32xf32>
    %25 = arith.mulf %23, %24 : vector<16x32xf32>
    %26 = arith.truncf %25 : vector<16x32xf32> to vector<16x32xbf16>
    %c0_9 = arith.constant 0 : index
    %c0_10 = arith.constant 0 : index
    %c0_11 = arith.constant 0 : index
    %27 = vector.load %arg3[%c0_9, %c0_10, %c0_11] : memref<1x32x32xbf16, #tpu.memory_space<vmem>>, vector<1x32x32xbf16>
    %28 = vector.shape_cast %27 : vector<1x32x32xbf16> to vector<32x32xbf16>
    %cst_12 = arith.constant dense<0.000000e+00> : vector<16x32xf32>
    %29 = tpu.matmul %26, %28, %cst_12 {dimension_numbers = #tpu.dot_dimension_numbers<[1], [0], [0], [1], [0, 0, 1, 1], [], []>} : vector<16x32xbf16>, vector<32x32xbf16>, vector<16x32xf32> -> vector<16x32xf32>
    %cst_13 = arith.constant 0.353553385 : f32
    %30 = vector.broadcast %cst_13 : f32 to vector<16x32xf32>
    %31 = arith.mulf %29, %30 : vector<16x32xf32>
    %32 = arith.truncf %3 : vector<16x32xf32> to vector<16x32xbf16>
    %c0_14 = arith.constant 0 : index
    %c0_15 = arith.constant 0 : index
    %c0_16 = arith.constant 0 : index
    %33 = vector.load %arg4[%c0_14, %c0_15, %c0_16] : memref<1x32x16xbf16, #tpu.memory_space<vmem>>, vector<1x32x16xbf16>
    %34 = vector.shape_cast %33 : vector<1x32x16xbf16> to vector<32x16xbf16>
    %cst_17 = arith.constant dense<0.000000e+00> : vector<16x16xf32>
    %35 = tpu.matmul %32, %34, %cst_17 {dimension_numbers = #tpu.dot_dimension_numbers<[1], [0], [0], [1], [0, 0, 1, 1], [], []>} : vector<16x32xbf16>, vector<32x16xbf16>, vector<16x16xf32> -> vector<16x16xf32>
    %36 = vector.extract_strided_slice %35 {offsets = [0, 0], sizes = [16, 8], strides = [1, 1]} : vector<16x16xf32> to vector<16x8xf32>
    %37 = vector.shape_cast %36 : vector<16x8xf32> to vector<2x8x8xf32>
    %38 = arith.truncf %37 : vector<2x8x8xf32> to vector<2x8x8xbf16>
    %39 = vector.extract_strided_slice %35 {offsets = [0, 8], sizes = [16, 8], strides = [1, 1]} : vector<16x16xf32> to vector<16x8xf32>
    %40 = vector.shape_cast %39 : vector<16x8xf32> to vector<2x8x8xf32>
    %41 = arith.truncf %40 : vector<2x8x8xf32> to vector<2x8x8xbf16>
    %42 = vector.extract_strided_slice %31 {offsets = [0, 0], sizes = [16, 8], strides = [1, 1]} : vector<16x32xf32> to vector<16x8xf32>
    %43 = vector.shape_cast %42 : vector<16x8xf32> to vector<2x8x8xf32>
    %44 = arith.truncf %43 : vector<2x8x8xf32> to vector<2x8x8xbf16>
    "tpu.trace_start"() <{level = 10 : i32, message = "bid,bjd->bij"}> : () -> ()
    %cst_18 = arith.constant dense<0.000000e+00> : vector<2x8x8xf32>
    %45 = tpu.matmul %44, %38, %cst_18 {dimension_numbers = #tpu.dot_dimension_numbers<[2], [2], [1], [1], [0, 0, 0, 1, 1, 1], [0], [0]>} : vector<2x8x8xbf16>, vector<2x8x8xbf16>, vector<2x8x8xf32> -> vector<2x8x8xf32>
    "tpu.trace_stop"() : () -> ()
    %cst_19 = arith.constant dense<0xFF800000> : vector<2x8xf32>
    %46 = vector.multi_reduction <maximumf>, %45, %cst_19 [2] : vector<2x8x8xf32> to vector<2x8xf32>
    %47 = vector.shape_cast %46 : vector<2x8xf32> to vector<2x8x1xf32>
    %48 = vector.broadcast %47 : vector<2x8x1xf32> to vector<2x8x8xf32>
    %49 = arith.subf %45, %48 : vector<2x8x8xf32>
    %50 = math.exp %49 : vector<2x8x8xf32>
    %cst_20 = arith.constant dense<0.000000e+00> : vector<2x8xf32>
    %51 = vector.multi_reduction <add>, %50, %cst_20 [2] : vector<2x8x8xf32> to vector<2x8xf32>
    %52 = vector.shape_cast %51 : vector<2x8xf32> to vector<2x8x1xf32>
    %53 = tpu.reciprocal %52 {approx = true} : vector<2x8x1xf32> -> vector<2x8x1xf32>
    %54 = vector.broadcast %53 : vector<2x8x1xf32> to vector<2x8x8xf32>
    %55 = arith.mulf %50, %54 : vector<2x8x8xf32>
    %56 = arith.truncf %55 : vector<2x8x8xf32> to vector<2x8x8xbf16>
    "tpu.trace_start"() <{level = 10 : i32, message = "bij,bjd->bid"}> : () -> ()
    %cst_21 = arith.constant dense<0.000000e+00> : vector<2x8x8xf32>
    %57 = tpu.matmul %56, %41, %cst_21 {dimension_numbers = #tpu.dot_dimension_numbers<[2], [1], [1], [2], [0, 0, 0, 1, 1, 2], [0], [0]>} : vector<2x8x8xbf16>, vector<2x8x8xbf16>, vector<2x8x8xf32> -> vector<2x8x8xf32>
    "tpu.trace_stop"() : () -> ()
    %58 = vector.shape_cast %57 : vector<2x8x8xf32> to vector<16x8xf32>
    %c0_22 = arith.constant 0 : index
    %c0_23 = arith.constant 0 : index
    %59 = vector.load %arg12[%c0_22, %c0_23] : memref<16x32xf32, #tpu.memory_space<vmem>>, vector<16x8xf32>
    tpu.vector_store %arg12[%c0_22, %c0_23], %58 {strides = array<i32>} : memref<16x32xf32, #tpu.memory_space<vmem>>, vector<16x8xf32>,
    %60 = vector.extract_strided_slice %31 {offsets = [0, 8], sizes = [16, 8], strides = [1, 1]} : vector<16x32xf32> to vector<16x8xf32>
    %61 = vector.shape_cast %60 : vector<16x8xf32> to vector<2x8x8xf32>
    %62 = arith.truncf %61 : vector<2x8x8xf32> to vector<2x8x8xbf16>
    "tpu.trace_start"() <{level = 10 : i32, message = "bid,bjd->bij"}> : () -> ()
    %cst_24 = arith.constant dense<0.000000e+00> : vector<2x8x8xf32>
    %63 = tpu.matmul %62, %38, %cst_24 {dimension_numbers = #tpu.dot_dimension_numbers<[2], [2], [1], [1], [0, 0, 0, 1, 1, 1], [0], [0]>} : vector<2x8x8xbf16>, vector<2x8x8xbf16>, vector<2x8x8xf32> -> vector<2x8x8xf32>
    "tpu.trace_stop"() : () -> ()
    %cst_25 = arith.constant dense<0xFF800000> : vector<2x8xf32>
    %64 = vector.multi_reduction <maximumf>, %63, %cst_25 [2] : vector<2x8x8xf32> to vector<2x8xf32>
    %65 = vector.shape_cast %64 : vector<2x8xf32> to vector<2x8x1xf32>
    %66 = vector.broadcast %65 : vector<2x8x1xf32> to vector<2x8x8xf32>
    %67 = arith.subf %63, %66 : vector<2x8x8xf32>
    %68 = math.exp %67 : vector<2x8x8xf32>
    %cst_26 = arith.constant dense<0.000000e+00> : vector<2x8xf32>
    %69 = vector.multi_reduction <add>, %68, %cst_26 [2] : vector<2x8x8xf32> to vector<2x8xf32>
    %70 = vector.shape_cast %69 : vector<2x8xf32> to vector<2x8x1xf32>
    %71 = tpu.reciprocal %70 {approx = true} : vector<2x8x1xf32> -> vector<2x8x1xf32>
    %72 = vector.broadcast %71 : vector<2x8x1xf32> to vector<2x8x8xf32>
    %73 = arith.mulf %68, %72 : vector<2x8x8xf32>
    %74 = arith.truncf %73 : vector<2x8x8xf32> to vector<2x8x8xbf16>
    "tpu.trace_start"() <{level = 10 : i32, message = "bij,bjd->bid"}> : () -> ()
    %cst_27 = arith.constant dense<0.000000e+00> : vector<2x8x8xf32>
    %75 = tpu.matmul %74, %41, %cst_27 {dimension_numbers = #tpu.dot_dimension_numbers<[2], [1], [1], [2], [0, 0, 0, 1, 1, 2], [0], [0]>} : vector<2x8x8xbf16>, vector<2x8x8xbf16>, vector<2x8x8xf32> -> vector<2x8x8xf32>
    "tpu.trace_stop"() : () -> ()
    %76 = vector.shape_cast %75 : vector<2x8x8xf32> to vector<16x8xf32>
    %c0_28 = arith.constant 0 : index
    %c8 = arith.constant 8 : index
    %77 = vector.load %arg12[%c0_28, %c8] : memref<16x32xf32, #tpu.memory_space<vmem>>, vector<16x8xf32>
    tpu.vector_store %arg12[%c0_28, %c8], %76 {strides = array<i32>} : memref<16x32xf32, #tpu.memory_space<vmem>>, vector<16x8xf32>,
    %78 = vector.extract_strided_slice %31 {offsets = [0, 16], sizes = [16, 8], strides = [1, 1]} : vector<16x32xf32> to vector<16x8xf32>
    %79 = vector.shape_cast %78 : vector<16x8xf32> to vector<2x8x8xf32>
    %80 = arith.truncf %79 : vector<2x8x8xf32> to vector<2x8x8xbf16>
    "tpu.trace_start"() <{level = 10 : i32, message = "bid,bjd->bij"}> : () -> ()
    %cst_29 = arith.constant dense<0.000000e+00> : vector<2x8x8xf32>
    %81 = tpu.matmul %80, %38, %cst_29 {dimension_numbers = #tpu.dot_dimension_numbers<[2], [2], [1], [1], [0, 0, 0, 1, 1, 1], [0], [0]>} : vector<2x8x8xbf16>, vector<2x8x8xbf16>, vector<2x8x8xf32> -> vector<2x8x8xf32>
    "tpu.trace_stop"() : () -> ()
    %cst_30 = arith.constant dense<0xFF800000> : vector<2x8xf32>
    %82 = vector.multi_reduction <maximumf>, %81, %cst_30 [2] : vector<2x8x8xf32> to vector<2x8xf32>
    %83 = vector.shape_cast %82 : vector<2x8xf32> to vector<2x8x1xf32>
    %84 = vector.broadcast %83 : vector<2x8x1xf32> to vector<2x8x8xf32>
    %85 = arith.subf %81, %84 : vector<2x8x8xf32>
    %86 = math.exp %85 : vector<2x8x8xf32>
    %cst_31 = arith.constant dense<0.000000e+00> : vector<2x8xf32>
    %87 = vector.multi_reduction <add>, %86, %cst_31 [2] : vector<2x8x8xf32> to vector<2x8xf32>
    %88 = vector.shape_cast %87 : vector<2x8xf32> to vector<2x8x1xf32>
    %89 = tpu.reciprocal %88 {approx = true} : vector<2x8x1xf32> -> vector<2x8x1xf32>
    %90 = vector.broadcast %89 : vector<2x8x1xf32> to vector<2x8x8xf32>
    %91 = arith.mulf %86, %90 : vector<2x8x8xf32>
    %92 = arith.truncf %91 : vector<2x8x8xf32> to vector<2x8x8xbf16>
    "tpu.trace_start"() <{level = 10 : i32, message = "bij,bjd->bid"}> : () -> ()
    %cst_32 = arith.constant dense<0.000000e+00> : vector<2x8x8xf32>
    %93 = tpu.matmul %92, %41, %cst_32 {dimension_numbers = #tpu.dot_dimension_numbers<[2], [1], [1], [2], [0, 0, 0, 1, 1, 2], [0], [0]>} : vector<2x8x8xbf16>, vector<2x8x8xbf16>, vector<2x8x8xf32> -> vector<2x8x8xf32>
    "tpu.trace_stop"() : () -> ()
    %94 = vector.shape_cast %93 : vector<2x8x8xf32> to vector<16x8xf32>
    %c0_33 = arith.constant 0 : index
    %c16 = arith.constant 16 : index
    %95 = vector.load %arg12[%c0_33, %c16] : memref<16x32xf32, #tpu.memory_space<vmem>>, vector<16x8xf32>
    tpu.vector_store %arg12[%c0_33, %c16], %94 {strides = array<i32>} : memref<16x32xf32, #tpu.memory_space<vmem>>, vector<16x8xf32>,
    %96 = vector.extract_strided_slice %31 {offsets = [0, 24], sizes = [16, 8], strides = [1, 1]} : vector<16x32xf32> to vector<16x8xf32>
    %97 = vector.shape_cast %96 : vector<16x8xf32> to vector<2x8x8xf32>
    %98 = arith.truncf %97 : vector<2x8x8xf32> to vector<2x8x8xbf16>
    "tpu.trace_start"() <{level = 10 : i32, message = "bid,bjd->bij"}> : () -> ()
    %cst_34 = arith.constant dense<0.000000e+00> : vector<2x8x8xf32>
    %99 = tpu.matmul %98, %38, %cst_34 {dimension_numbers = #tpu.dot_dimension_numbers<[2], [2], [1], [1], [0, 0, 0, 1, 1, 1], [0], [0]>} : vector<2x8x8xbf16>, vector<2x8x8xbf16>, vector<2x8x8xf32> -> vector<2x8x8xf32>
    "tpu.trace_stop"() : () -> ()
    %cst_35 = arith.constant dense<0xFF800000> : vector<2x8xf32>
    %100 = vector.multi_reduction <maximumf>, %99, %cst_35 [2] : vector<2x8x8xf32> to vector<2x8xf32>
    %101 = vector.shape_cast %100 : vector<2x8xf32> to vector<2x8x1xf32>
    %102 = vector.broadcast %101 : vector<2x8x1xf32> to vector<2x8x8xf32>
    %103 = arith.subf %99, %102 : vector<2x8x8xf32>
    %104 = math.exp %103 : vector<2x8x8xf32>
    %cst_36 = arith.constant dense<0.000000e+00> : vector<2x8xf32>
    %105 = vector.multi_reduction <add>, %104, %cst_36 [2] : vector<2x8x8xf32> to vector<2x8xf32>
    %106 = vector.shape_cast %105 : vector<2x8xf32> to vector<2x8x1xf32>
    %107 = tpu.reciprocal %106 {approx = true} : vector<2x8x1xf32> -> vector<2x8x1xf32>
    %108 = vector.broadcast %107 : vector<2x8x1xf32> to vector<2x8x8xf32>
    %109 = arith.mulf %104, %108 : vector<2x8x8xf32>
    %110 = arith.truncf %109 : vector<2x8x8xf32> to vector<2x8x8xbf16>
    "tpu.trace_start"() <{level = 10 : i32, message = "bij,bjd->bid"}> : () -> ()
    %cst_37 = arith.constant dense<0.000000e+00> : vector<2x8x8xf32>
    %111 = tpu.matmul %110, %41, %cst_37 {dimension_numbers = #tpu.dot_dimension_numbers<[2], [1], [1], [2], [0, 0, 0, 1, 1, 2], [0], [0]>} : vector<2x8x8xbf16>, vector<2x8x8xbf16>, vector<2x8x8xf32> -> vector<2x8x8xf32>
    "tpu.trace_stop"() : () -> ()
    %112 = vector.shape_cast %111 : vector<2x8x8xf32> to vector<16x8xf32>
    %c0_38 = arith.constant 0 : index
    %c24 = arith.constant 24 : index
    %113 = vector.load %arg12[%c0_38, %c24] : memref<16x32xf32, #tpu.memory_space<vmem>>, vector<16x8xf32>
    tpu.vector_store %arg12[%c0_38, %c24], %112 {strides = array<i32>} : memref<16x32xf32, #tpu.memory_space<vmem>>, vector<16x8xf32>,
    %c0_39 = arith.constant 0 : index
    %c0_40 = arith.constant 0 : index
    %114 = vector.load %arg12[%c0_39, %c0_40] : memref<16x32xf32, #tpu.memory_space<vmem>>, vector<16x32xf32>
    %115 = arith.truncf %114 : vector<16x32xf32> to vector<16x32xbf16>
    %c0_41 = arith.constant 0 : index
    %c0_42 = arith.constant 0 : index
    %c0_43 = arith.constant 0 : index
    %116 = vector.load %arg5[%c0_41, %c0_42, %c0_43] : memref<1x32x32xbf16, #tpu.memory_space<vmem>>, vector<1x32x32xbf16>
    %117 = vector.shape_cast %116 : vector<1x32x32xbf16> to vector<32x32xbf16>
    %cst_44 = arith.constant dense<0.000000e+00> : vector<16x32xf32>
    %118 = tpu.matmul %115, %117, %cst_44 {dimension_numbers = #tpu.dot_dimension_numbers<[1], [0], [0], [1], [0, 0, 1, 1], [], []>} : vector<16x32xbf16>, vector<32x32xbf16>, vector<16x32xf32> -> vector<16x32xf32>
    %119 = arith.addf %3, %118 : vector<16x32xf32>
    %c0_45 = arith.constant 0 : index
    %c0_46 = arith.constant 0 : index
    %c0_47 = arith.constant 0 : index
    %120 = vector.load %arg6[%c0_45, %c0_46, %c0_47] : memref<1x1x32xf32, #tpu.memory_space<vmem>>, vector<1x1x32xf32>
    %121 = vector.shape_cast %120 : vector<1x1x32xf32> to vector<1x32xf32>
    %cst_48 = arith.constant dense<0.000000e+00> : vector<16xf32>
    %122 = vector.multi_reduction <add>, %119, %cst_48 [1] : vector<16x32xf32> to vector<16xf32>
    %123 = vector.shape_cast %122 : vector<16xf32> to vector<16x1xf32>
    %cst_49 = arith.constant 3.200000e+01 : f32
    %124 = vector.broadcast %cst_49 : f32 to vector<16x1xf32>
    %125 = arith.divf %123, %124 : vector<16x1xf32>
    %126 = vector.broadcast %125 : vector<16x1xf32> to vector<16x32xf32>
    %127 = arith.subf %119, %126 : vector<16x32xf32>
    %128 = arith.mulf %127, %127 : vector<16x32xf32>
    %cst_50 = arith.constant dense<0.000000e+00> : vector<16xf32>
    %129 = vector.multi_reduction <add>, %128, %cst_50 [1] : vector<16x32xf32> to vector<16xf32>
    %130 = vector.shape_cast %129 : vector<16xf32> to vector<16x1xf32>
    %cst_51 = arith.constant 3.200000e+01 : f32
    %131 = vector.broadcast %cst_51 : f32 to vector<16x1xf32>
    %132 = arith.divf %130, %131 : vector<16x1xf32>
    %133 = vector.broadcast %125 : vector<16x1xf32> to vector<16x32xf32>
    %134 = arith.subf %119, %133 : vector<16x32xf32>
    %cst_52 = arith.constant 9.99999974E-6 : f32
    %135 = vector.broadcast %cst_52 : f32 to vector<16x1xf32>
    %136 = arith.addf %132, %135 : vector<16x1xf32>
    %137 = math.rsqrt %136 : vector<16x1xf32>
    %138 = vector.broadcast %137 : vector<16x1xf32> to vector<16x32xf32>
    %139 = arith.mulf %134, %138 : vector<16x32xf32>
    %140 = vector.broadcast %121 : vector<1x32xf32> to vector<16x32xf32>
    %141 = arith.mulf %139, %140 : vector<16x32xf32>
    %142 = arith.truncf %141 : vector<16x32xf32> to vector<16x32xbf16>
    %c0_53 = arith.constant 0 : index
    %c0_54 = arith.constant 0 : index
    %c0_55 = arith.constant 0 : index
    %143 = vector.load %arg7[%c0_53, %c0_54, %c0_55] : memref<1x32x128xbf16, #tpu.memory_space<vmem>>, vector<1x32x128xbf16>
    %144 = vector.shape_cast %143 : vector<1x32x128xbf16> to vector<32x128xbf16>
    %cst_56 = arith.constant dense<0.000000e+00> : vector<16x128xf32>
    %145 = tpu.matmul %142, %144, %cst_56 {dimension_numbers = #tpu.dot_dimension_numbers<[1], [0], [0], [1], [0, 0, 1, 1], [], []>} : vector<16x32xbf16>, vector<32x128xbf16>, vector<16x128xf32> -> vector<16x128xf32>
    %c0_57 = arith.constant 0 : index
    %c0_58 = arith.constant 0 : index
    %c0_59 = arith.constant 0 : index
    %146 = vector.load %arg8[%c0_57, %c0_58, %c0_59] : memref<1x1x128xf32, #tpu.memory_space<vmem>>, vector<1x1x128xf32>
    %147 = vector.shape_cast %146 : vector<1x1x128xf32> to vector<1x128xf32>
    %148 = vector.broadcast %147 : vector<1x128xf32> to vector<16x128xf32>
    %149 = arith.addf %145, %148 : vector<16x128xf32>
    %cst_60 = arith.constant 5.000000e-01 : f32
    %150 = vector.broadcast %cst_60 : f32 to vector<16x128xf32>
    %151 = arith.mulf %150, %149 : vector<16x128xf32>
    %152 = arith.mulf %149, %149 : vector<16x128xf32>
    %153 = arith.mulf %152, %149 : vector<16x128xf32>
    %cst_61 = arith.constant 4.471500e-02 : f32
    %154 = vector.broadcast %cst_61 : f32 to vector<16x128xf32>
    %155 = arith.mulf %154, %153 : vector<16x128xf32>
    %156 = arith.addf %149, %155 : vector<16x128xf32>
    %cst_62 = arith.constant 0.797884583 : f32
    %157 = vector.broadcast %cst_62 : f32 to vector<16x128xf32>
    %158 = arith.mulf %157, %156 : vector<16x128xf32>
    %159 = math.tanh %158 : vector<16x128xf32>
    %cst_63 = arith.constant 1.000000e+00 : f32
    %160 = vector.broadcast %cst_63 : f32 to vector<16x128xf32>
    %161 = arith.addf %160, %159 : vector<16x128xf32>
    %162 = arith.mulf %151, %161 : vector<16x128xf32>
    %163 = arith.truncf %162 : vector<16x128xf32> to vector<16x128xbf16>
    %c0_64 = arith.constant 0 : index
    %c0_65 = arith.constant 0 : index
    %c0_66 = arith.constant 0 : index
    %164 = vector.load %arg9[%c0_64, %c0_65, %c0_66] : memref<1x128x32xbf16, #tpu.memory_space<vmem>>, vector<1x128x32xbf16>
    %165 = vector.shape_cast %164 : vector<1x128x32xbf16> to vector<128x32xbf16>
    %cst_67 = arith.constant dense<0.000000e+00> : vector<16x32xf32>
    %166 = tpu.matmul %163, %165, %cst_67 {dimension_numbers = #tpu.dot_dimension_numbers<[1], [0], [0], [1], [0, 0, 1, 1], [], []>} : vector<16x128xbf16>, vector<128x32xbf16>, vector<16x32xf32> -> vector<16x32xf32>
    %167 = arith.addf %119, %166 : vector<16x32xf32>
    %c0_68 = arith.constant 0 : index
    %c0_69 = arith.constant 0 : index
    %c0_70 = arith.constant 0 : index
    %168 = vector.load %arg10[%c0_68, %c0_69, %c0_70] : memref<1x1x32xf32, #tpu.memory_space<vmem>>, vector<1x1x32xf32>
    %169 = vector.shape_cast %168 : vector<1x1x32xf32> to vector<1x32xf32>
    %170 = vector.broadcast %169 : vector<1x32xf32> to vector<16x32xf32>
    %171 = arith.addf %167, %170 : vector<16x32xf32>
    %c0_71 = arith.constant 0 : index
    %c0_72 = arith.constant 0 : index
    %172 = vector.load %arg11[%c0_71, %c0_72] : memref<16x32xf32, #tpu.memory_space<vmem>>, vector<16x32xf32>
    tpu.vector_store %arg11[%c0_71, %c0_72], %171 {strides = array<i32>} : memref<16x32xf32, #tpu.memory_space<vmem>>, vector<16x32xf32>,
    return
  }
  func.func @transform_0(%arg0: i32) -> (i32, i32) {
    %c0_i32 = arith.constant 0 : i32
    %c0_i32_0 = arith.constant 0 : i32
    %c0_i32_1 = arith.constant 0 : i32
    return %c0_i32, %c0_i32_0 : i32, i32
  }
  func.func @transform_1(%arg0: i32) -> (i32, i32, i32) {
    %c0_i32 = arith.constant 0 : i32
    %c0_i32_0 = arith.constant 0 : i32
    %c0_i32_1 = arith.constant 0 : i32
    return %arg0, %c0_i32, %c0_i32_0 : i32, i32, i32
  }
  func.func @transform_2(%arg0: i32) -> (i32, i32, i32) {
    %c0_i32 = arith.constant 0 : i32
    %c0_i32_0 = arith.constant 0 : i32
    %c0_i32_1 = arith.constant 0 : i32
    return %arg0, %c0_i32, %c0_i32_0 : i32, i32, i32
  }
  func.func @transform_3(%arg0: i32) -> (i32, i32, i32) {
    %c0_i32 = arith.constant 0 : i32
    %c0_i32_0 = arith.constant 0 : i32
    %c0_i32_1 = arith.constant 0 : i32
    return %arg0, %c0_i32, %c0_i32_0 : i32, i32, i32
  }
  func.func @transform_4(%arg0: i32) -> (i32, i32, i32) {
    %c0_i32 = arith.constant 0 : i32
    %c0_i32_0 = arith.constant 0 : i32
    %c0_i32_1 = arith.constant 0 : i32
    return %arg0, %c0_i32, %c0_i32_0 : i32, i32, i32
  }
  func.func @transform_5(%arg0: i32) -> (i32, i32, i32) {
    %c0_i32 = arith.constant 0 : i32
    %c0_i32_0 = arith.constant 0 : i32
    %c0_i32_1 = arith.constant 0 : i32
    return %arg0, %c0_i32, %c0_i32_0 : i32, i32, i32
  }
  func.func @transform_6(%arg0: i32) -> (i32, i32, i32) {
    %c0_i32 = arith.constant 0 : i32
    %c0_i32_0 = arith.constant 0 : i32
    %c0_i32_1 = arith.constant 0 : i32
    return %arg0, %c0_i32, %c0_i32_0 : i32, i32, i32
  }
  func.func @transform_7(%arg0: i32) -> (i32, i32, i32) {
    %c0_i32 = arith.constant 0 : i32
    %c0_i32_0 = arith.constant 0 : i32
    %c0_i32_1 = arith.constant 0 : i32
    return %arg0, %c0_i32, %c0_i32_0 : i32, i32, i32
  }
  func.func @transform_8(%arg0: i32) -> (i32, i32, i32) {
    %c0_i32 = arith.constant 0 : i32
    %c0_i32_0 = arith.constant 0 : i32
    %c0_i32_1 = arith.constant 0 : i32
    return %arg0, %c0_i32, %c0_i32_0 : i32, i32, i32
  }
  func.func @transform_9(%arg0: i32) -> (i32, i32, i32) {
    %c0_i32 = arith.constant 0 : i32
    %c0_i32_0 = arith.constant 0 : i32
    %c0_i32_1 = arith.constant 0 : i32
    return %arg0, %c0_i32, %c0_i32_0 : i32, i32, i32
  }
  func.func @transform_10(%arg0: i32) -> (i32, i32) {
    %c0_i32 = arith.constant 0 : i32
    %c0_i32_0 = arith.constant 0 : i32
    %c0_i32_1 = arith.constant 0 : i32
    return %c0_i32, %c0_i32_0 : i32, i32
  }
}

</mosaic_0001>

<llo_original>
// kernel: tpu_custom_call.1
$region0: #{tpu_custom_call.1}
  #allocation0 [shape = 'u32[]', space=smem, size = 0x4, offset = 0x4, fixed_abs, tag = 'smem constant byte address 0x4 - core index']
  #allocation1 [shape = 'u32[72,128]{1,0:T(1,128)}', space=vmem, size = 0x9000, scoped, tag = 'internal scratch']
  #allocation2 [shape = 'f32[16,32]{1,0:T(8,128)}', space=vmem, size = 0x2000, scoped, tag = 'scratch operand']
  %s0 = inlined_call_operand.vmem [shape: f32[16,32], index: 0, kind: input, shape index: {}]
  %s1 = inlined_call_operand.vmem [shape: f32[2,1,32], index: 1, kind: input, shape index: {}]
  %s2 = inlined_call_operand.vmem [shape: bf16[2,32,32], index: 2, kind: input, shape index: {}]
  %s3 = inlined_call_operand.vmem [shape: bf16[2,32,16], index: 3, kind: input, shape index: {}]
  %s4 = inlined_call_operand.vmem [shape: bf16[2,32,32], index: 4, kind: input, shape index: {}]
  %s5 = inlined_call_operand.vmem [shape: f32[2,1,32], index: 5, kind: input, shape index: {}]
  %s6 = inlined_call_operand.vmem [shape: bf16[2,32,128], index: 6, kind: input, shape index: {}]
  %s7 = inlined_call_operand.vmem [shape: f32[2,1,128], index: 7, kind: input, shape index: {}]
  %s8 = inlined_call_operand.vmem [shape: bf16[2,128,32], index: 8, kind: input, shape index: {}]
  %s9 = inlined_call_operand.vmem [shape: f32[2,1,32], index: 9, kind: input, shape index: {}]
  %s10 = inlined_call_operand.hbm [shape: f32[16,32], index: 10, kind: output, shape index: {}]
  %s11 = sld [smem:[#allocation0]]
  $region77: #{tpu_custom_call.1} parent=0
    _
  %s13 = ssub.s32 1, %s11
  %s14 = scalar_select 0, %s13, %s11
  $region1: #{tpu_custom_call.1} parent=0
    #allocation3 [shape = 'u8[8192]{0}', space=vmem, size = 0x2000, scoped, tag = 'output window, operand 0, single buffered']
    #allocation4 [shape = 's32[2]{0}', space=sflag, size = 0x8, scoped, tag = 'scoped memory for tpu_custom_call.1']
    %15 = vsyncpa [#allocation4], 0
    loop: start=0, step=1, limit=4
    $region2: #{tpu_custom_call.1} parent=1 // loop_pre_header
      _
    $region3: #{tpu_custom_call.1} parent=1 // loop_header
      %s17 = sphi 0, %s21
      %p18 = scmp.ge.s32.totalorder %s17, 4
      %s25 = sphi 0, %s25
      %s27 = sphi 0, %s25
      %s28 = sphi 0, %s27
      %s42 = sphi 0, %s28
      %s48 = sphi 0, %s50
      %s51 = sphi 0, %s48
      %s52 = sphi 0, %s51
      %s68 = sphi 0, %s52
      %s74 = sphi 0, %s76
      %s77 = sphi 0, %s74
      %s78 = sphi 0, %s77
      %s94 = sphi 0, %s78
      %s100 = sphi 0, %s102
      %s103 = sphi 0, %s100
      %s104 = sphi 0, %s103
      %s120 = sphi 0, %s104
      %s126 = sphi 0, %s128
      %s129 = sphi 0, %s126
      %s130 = sphi 0, %s129
      %s146 = sphi 0, %s130
      %s152 = sphi 0, %s154
      %s155 = sphi 0, %s152
      %s156 = sphi 0, %s155
      %s172 = sphi 0, %s156
      %s178 = sphi 0, %s180
      %s181 = sphi 0, %s178
      %s182 = sphi 0, %s181
      %s198 = sphi 0, %s182
      %s204 = sphi 0, %s206
      %s207 = sphi 0, %s204
      %s208 = sphi 0, %s207
      %s224 = sphi 0, %s208
      %s230 = sphi 0, %s232
      %s233 = sphi 0, %s230
      %s234 = sphi 0, %s233
      %s250 = sphi 0, %s234
      %s256 = sphi 0, %s258
      %s259 = sphi 0, %s256
      %s260 = sphi 0, %s259
      %s276 = sphi 0, %s260
      %s280 = sphi 0, %s280
      %s282 = sphi 0, %s280
      %s283 = sphi 0, %s282
      %s297 = sphi 0, %s283
    $region4: #{tpu_custom_call.1} parent=1 // loop_header_branch
      %20 = sbr.rel (%p18) target = $region8
    $region5: #{tpu_custom_call.1} parent=1 // loop_body
      %s22 = ssub.s32 %s17, 1
      %s23 = ssub.s32 %s17, 2
      %s24 = sadd.s32 %s17, 1
      %s26 = sadd.s32 %s25, 1
      %p29 = scmp.eq.s32.totalorder %s17, 1
      %p30 = scmp.ne.s32.totalorder %s25, %s27
      %p31 = scmp.eq.s32.totalorder %s17, 0
      %p32 = por %p30, %p31
      %p33 = scmp.ne.s32.totalorder %s25, %s27
      %p34 = scmp.eq.s32.totalorder %s22, 1
      %p35 = por %p33, %p34
      %p36 = scmp.ne.s32.totalorder %s27, %s28
      %p37 = scmp.eq.s32.totalorder %s22, 0
      %p38 = por %p36, %p37
      %p39 = scmp.ne.s32.totalorder %s27, %s28
      %p40 = scmp.eq.s32.totalorder %s23, 1
      %p41 = por %p39, %p40
      %p43 = scmp.ne.s32.totalorder %s28, %s42
      %p44 = scmp.eq.s32.totalorder %s23, 0
      %p45 = por %p43, %p44
      %s46 = ssub.s32 %s17, %s24
      %p47 = scmp.eq.s32.totalorder %s46, 0
      %s49 = sadd.s32 %s48, 1
      %s50 = scalar_select %p47, %s48, %s49
      %p53 = pneg %p47
      %p54 = scmp.eq.s32.totalorder %s17, 1
      %p55 = por %p53, %p54
      %p56 = scmp.ne.s32.totalorder %s48, %s51
      %p57 = scmp.eq.s32.totalorder %s17, 0
      %p58 = por %p56, %p57
      %p59 = scmp.ne.s32.totalorder %s48, %s51
      %p60 = scmp.eq.s32.totalorder %s22, 1
      %p61 = por %p59, %p60
      %p62 = scmp.ne.s32.totalorder %s51, %s52
      %p63 = scmp.eq.s32.totalorder %s22, 0
      %p64 = por %p62, %p63
      %p65 = scmp.ne.s32.totalorder %s51, %s52
      %p66 = scmp.eq.s32.totalorder %s23, 1
      %p67 = por %p65, %p66
      %p69 = scmp.ne.s32.totalorder %s52, %s68
      %p70 = scmp.eq.s32.totalorder %s23, 0
      %p71 = por %p69, %p70
      %s72 = ssub.s32 %s17, %s24
      %p73 = scmp.eq.s32.totalorder %s72, 0
      %s75 = sadd.s32 %s74, 1
      %s76 = scalar_select %p73, %s74, %s75
      %p79 = pneg %p73
      %p80 = scmp.eq.s32.totalorder %s17, 1
      %p81 = por %p79, %p80
      %p82 = scmp.ne.s32.totalorder %s74, %s77
      %p83 = scmp.eq.s32.totalorder %s17, 0
      %p84 = por %p82, %p83
      %p85 = scmp.ne.s32.totalorder %s74, %s77
      %p86 = scmp.eq.s32.totalorder %s22, 1
      %p87 = por %p85, %p86
      %p88 = scmp.ne.s32.totalorder %s77, %s78
      %p89 = scmp.eq.s32.totalorder %s22, 0
      %p90 = por %p88, %p89
      %p91 = scmp.ne.s32.totalorder %s77, %s78
      %p92 = scmp.eq.s32.totalorder %s23, 1
      %p93 = por %p91, %p92
      %p95 = scmp.ne.s32.totalorder %s78, %s94
      %p96 = scmp.eq.s32.totalorder %s23, 0
      %p97 = por %p95, %p96
      %s98 = ssub.s32 %s17, %s24
      %p99 = scmp.eq.s32.totalorder %s98, 0
      %s101 = sadd.s32 %s100, 1
      %s102 = scalar_select %p99, %s100, %s101
      %p105 = pneg %p99
      %p106 = scmp.eq.s32.totalorder %s17, 1
      %p107 = por %p105, %p106
      %p108 = scmp.ne.s32.totalorder %s100, %s103
      %p109 = scmp.eq.s32.totalorder %s17, 0
      %p110 = por %p108, %p109
      %p111 = scmp.ne.s32.totalorder %s100, %s103
      %p112 = scmp.eq.s32.totalorder %s22, 1
      %p113 = por %p111, %p112
      %p114 = scmp.ne.s32.totalorder %s103, %s104
      %p115 = scmp.eq.s32.totalorder %s22, 0
      %p116 = por %p114, %p115
      %p117 = scmp.ne.s32.totalorder %s103, %s104
      %p118 = scmp.eq.s32.totalorder %s23, 1
      %p119 = por %p117, %p118
      %p121 = scmp.ne.s32.totalorder %s104, %s120
      %p122 = scmp.eq.s32.totalorder %s23, 0
      %p123 = por %p121, %p122
      %s124 = ssub.s32 %s17, %s24
      %p125 = scmp.eq.s32.totalorder %s124, 0
      %s127 = sadd.s32 %s126, 1
      %s128 = scalar_select %p125, %s126, %s127
      %p131 = pneg %p125
      %p132 = scmp.eq.s32.totalorder %s17, 1
      %p133 = por %p131, %p132
      %p134 = scmp.ne.s32.totalorder %s126, %s129
      %p135 = scmp.eq.s32.totalorder %s17, 0
      %p136 = por %p134, %p135
      %p137 = scmp.ne.s32.totalorder %s126, %s129
      %p138 = scmp.eq.s32.totalorder %s22, 1
      %p139 = por %p137, %p138
      %p140 = scmp.ne.s32.totalorder %s129, %s130
      %p141 = scmp.eq.s32.totalorder %s22, 0
      %p142 = por %p140, %p141
      %p143 = scmp.ne.s32.totalorder %s129, %s130
      %p144 = scmp.eq.s32.totalorder %s23, 1
      %p145 = por %p143, %p144
      %p147 = scmp.ne.s32.totalorder %s130, %s146
      %p148 = scmp.eq.s32.totalorder %s23, 0
      %p149 = por %p147, %p148
      %s150 = ssub.s32 %s17, %s24
      %p151 = scmp.eq.s32.totalorder %s150, 0
      %s153 = sadd.s32 %s152, 1
      %s154 = scalar_select %p151, %s152, %s153
      %p157 = pneg %p151
      %p158 = scmp.eq.s32.totalorder %s17, 1
      %p159 = por %p157, %p158
      %p160 = scmp.ne.s32.totalorder %s152, %s155
      %p161 = scmp.eq.s32.totalorder %s17, 0
      %p162 = por %p160, %p161
      %p163 = scmp.ne.s32.totalorder %s152, %s155
      %p164 = scmp.eq.s32.totalorder %s22, 1
      %p165 = por %p163, %p164
      %p166 = scmp.ne.s32.totalorder %s155, %s156
      %p167 = scmp.eq.s32.totalorder %s22, 0
      %p168 = por %p166, %p167
      %p169 = scmp.ne.s32.totalorder %s155, %s156
      %p170 = scmp.eq.s32.totalorder %s23, 1
      %p171 = por %p169, %p170
      %p173 = scmp.ne.s32.totalorder %s156, %s172
      %p174 = scmp.eq.s32.totalorder %s23, 0
      %p175 = por %p173, %p174
      %s176 = ssub.s32 %s17, %s24
      %p177 = scmp.eq.s32.totalorder %s176, 0
      %s179 = sadd.s32 %s178, 1
      %s180 = scalar_select %p177, %s178, %s179
      %p183 = pneg %p177
      %p184 = scmp.eq.s32.totalorder %s17, 1
      %p185 = por %p183, %p184
      %p186 = scmp.ne.s32.totalorder %s178, %s181
      %p187 = scmp.eq.s32.totalorder %s17, 0
      %p188 = por %p186, %p187
      %p189 = scmp.ne.s32.totalorder %s178, %s181
      %p190 = scmp.eq.s32.totalorder %s22, 1
      %p191 = por %p189, %p190
      %p192 = scmp.ne.s32.totalorder %s181, %s182
      %p193 = scmp.eq.s32.totalorder %s22, 0
      %p194 = por %p192, %p193
      %p195 = scmp.ne.s32.totalorder %s181, %s182
      %p196 = scmp.eq.s32.totalorder %s23, 1
      %p197 = por %p195, %p196
      %p199 = scmp.ne.s32.totalorder %s182, %s198
      %p200 = scmp.eq.s32.totalorder %s23, 0
      %p201 = por %p199, %p200
      %s202 = ssub.s32 %s17, %s24
      %p203 = scmp.eq.s32.totalorder %s202, 0
      %s205 = sadd.s32 %s204, 1
      %s206 = scalar_select %p203, %s204, %s205
      %p209 = pneg %p203
      %p210 = scmp.eq.s32.totalorder %s17, 1
      %p211 = por %p209, %p210
      %p212 = scmp.ne.s32.totalorder %s204, %s207
      %p213 = scmp.eq.s32.totalorder %s17, 0
      %p214 = por %p212, %p213
      %p215 = scmp.ne.s32.totalorder %s204, %s207
      %p216 = scmp.eq.s32.totalorder %s22, 1
      %p217 = por %p215, %p216
      %p218 = scmp.ne.s32.totalorder %s207, %s208
      %p219 = scmp.eq.s32.totalorder %s22, 0
      %p220 = por %p218, %p219
      %p221 = scmp.ne.s32.totalorder %s207, %s208
      %p222 = scmp.eq.s32.totalorder %s23, 1
      %p223 = por %p221, %p222
      %p225 = scmp.ne.s32.totalorder %s208, %s224
      %p226 = scmp.eq.s32.totalorder %s23, 0
      %p227 = por %p225, %p226
      %s228 = ssub.s32 %s17, %s24
      %p229 = scmp.eq.s32.totalorder %s228, 0
      %s231 = sadd.s32 %s230, 1
      %s232 = scalar_select %p229, %s230, %s231
      %p235 = pneg %p229
      %p236 = scmp.eq.s32.totalorder %s17, 1
      %p237 = por %p235, %p236
      %p238 = scmp.ne.s32.totalorder %s230, %s233
      %p239 = scmp.eq.s32.totalorder %s17, 0
      %p240 = por %p238, %p239
      %p241 = scmp.ne.s32.totalorder %s230, %s233
      %p242 = scmp.eq.s32.totalorder %s22, 1
      %p243 = por %p241, %p242
      %p244 = scmp.ne.s32.totalorder %s233, %s234
      %p245 = scmp.eq.s32.totalorder %s22, 0
      %p246 = por %p244, %p245
      %p247 = scmp.ne.s32.totalorder %s233, %s234
      %p248 = scmp.eq.s32.totalorder %s23, 1
      %p249 = por %p247, %p248
      %p251 = scmp.ne.s32.totalorder %s234, %s250
      %p252 = scmp.eq.s32.totalorder %s23, 0
      %p253 = por %p251, %p252
      %s254 = ssub.s32 %s17, %s24
      %p255 = scmp.eq.s32.totalorder %s254, 0
      %s257 = sadd.s32 %s256, 1
      %s258 = scalar_select %p255, %s256, %s257
      %p261 = pneg %p255
      %p262 = scmp.eq.s32.totalorder %s17, 1
      %p263 = por %p261, %p262
      %p264 = scmp.ne.s32.totalorder %s256, %s259
      %p265 = scmp.eq.s32.totalorder %s17, 0
      %p266 = por %p264, %p265
      %p267 = scmp.ne.s32.totalorder %s256, %s259
      %p268 = scmp.eq.s32.totalorder %s22, 1
      %p269 = por %p267, %p268
      %p270 = scmp.ne.s32.totalorder %s259, %s260
      %p271 = scmp.eq.s32.totalorder %s22, 0
      %p272 = por %p270, %p271
      %p273 = scmp.ne.s32.totalorder %s259, %s260
      %p274 = scmp.eq.s32.totalorder %s23, 1
      %p275 = por %p273, %p274
      %p277 = scmp.ne.s32.totalorder %s260, %s276
      %p278 = scmp.eq.s32.totalorder %s23, 0
      %p279 = por %p277, %p278
      %s281 = sadd.s32 %s280, 1
      %p284 = scmp.eq.s32.totalorder %s17, 1
      %p285 = scmp.ne.s32.totalorder %s280, %s282
      %p286 = scmp.eq.s32.totalorder %s17, 0
      %p287 = por %p285, %p286
      %p288 = scmp.ne.s32.totalorder %s280, %s282
      %p289 = scmp.eq.s32.totalorder %s22, 1
      %p290 = por %p288, %p289
      %p291 = scmp.ne.s32.totalorder %s282, %s283
      %p292 = scmp.eq.s32.totalorder %s22, 0
      %p293 = por %p291, %p292
      %p294 = scmp.ne.s32.totalorder %s282, %s283
      %p295 = scmp.eq.s32.totalorder %s23, 1
      %p296 = por %p294, %p295
      %p298 = scmp.ne.s32.totalorder %s283, %s297
      %p299 = scmp.eq.s32.totalorder %s23, 0
      %p300 = por %p298, %p299
      %p301 = scmp.le.s32.totalorder 1, %s17
      %p302 = scmp.lt.s32.totalorder %s17, 3
      %p303 = pnand %p301, %p302
      %p304 = pneg %p303
      // Predicated region
      $region9: #{tpu_custom_call.1} parent=5 // pred_check
        _
      $region10: #{tpu_custom_call.1} parent=5 // pred_check_branch
        %306 = sbr.rel (%p303) target = $region12
      $region11: #{tpu_custom_call.1} parent=5 // pred_region
        %s307 = ssub.s32 %s17, 1
        // Predicated region
        $region13: #{tpu_custom_call.1} parent=11 // pred_check
          %p308 = pneg %p38
        $region14: #{tpu_custom_call.1} parent=11 // pred_check_branch
          %310 = sbr.rel (%p308) target = $region16
        $region15: #{tpu_custom_call.1} parent=11 // pred_region
          _
        $region16: #{tpu_custom_call.1} parent=11 // pred_fallthru
          _
      $region12: #{tpu_custom_call.1} parent=5 // pred_fallthru
        _
      %p311 = scmp.lt.s32.totalorder %s17, 2
      // Predicated region
      $region17: #{tpu_custom_call.1} parent=5 // pred_check
        %p312 = pneg %p311
      $region18: #{tpu_custom_call.1} parent=5 // pred_check_branch
        %314 = sbr.rel (%p312) target = $region20
      $region19: #{tpu_custom_call.1} parent=5 // pred_region
        // Predicated region
        $region21: #{tpu_custom_call.1} parent=19 // pred_check
          %p315 = pneg %p58
        $region22: #{tpu_custom_call.1} parent=19 // pred_check_branch
          %317 = sbr.rel (%p315) target = $region24
        $region23: #{tpu_custom_call.1} parent=19 // pred_region
          %p318 = scmp.lt.s32.totalorder %s17, 1
          %s319 = scalar_select %p318, %s17, 1
          %s320 = scalar_lea.vmem %s1, %s319
        $region24: #{tpu_custom_call.1} parent=19 // pred_fallthru
          _
        // Predicated region
        $region25: #{tpu_custom_call.1} parent=19 // pred_check
          %p321 = pneg %p84
        $region26: #{tpu_custom_call.1} parent=19 // pred_check_branch
          %323 = sbr.rel (%p321) target = $region28
        $region27: #{tpu_custom_call.1} parent=19 // pred_region
          %p324 = scmp.lt.s32.totalorder %s17, 1
          %s325 = scalar_select %p324, %s17, 1
          %s326 = smul.addr %s325, 4
          %s327 = smul.addr %s326, 4
          %s328 = scalar_lea.vmem %s2, %s327
        $region28: #{tpu_custom_call.1} parent=19 // pred_fallthru
          _
        // Predicated region
        $region29: #{tpu_custom_call.1} parent=19 // pred_check
          %p329 = pneg %p110
        $region30: #{tpu_custom_call.1} parent=19 // pred_check_branch
          %331 = sbr.rel (%p329) target = $region32
        $region31: #{tpu_custom_call.1} parent=19 // pred_region
          %p332 = scmp.lt.s32.totalorder %s17, 1
          %s333 = scalar_select %p332, %s17, 1
          %s334 = smul.addr %s333, 4
          %s335 = smul.addr %s334, 4
          %s336 = scalar_lea.vmem %s3, %s335
        $region32: #{tpu_custom_call.1} parent=19 // pred_fallthru
          _
        // Predicated region
        $region33: #{tpu_custom_call.1} parent=19 // pred_check
          %p337 = pneg %p136
        $region34: #{tpu_custom_call.1} parent=19 // pred_check_branch
          %339 = sbr.rel (%p337) target = $region36
        $region35: #{tpu_custom_call.1} parent=19 // pred_region
          %p340 = scmp.lt.s32.totalorder %s17, 1
          %s341 = scalar_select %p340, %s17, 1
          %s342 = smul.addr %s341, 4
          %s343 = smul.addr %s342, 4
          %s344 = scalar_lea.vmem %s4, %s343
        $region36: #{tpu_custom_call.1} parent=19 // pred_fallthru
          _
        // Predicated region
        $region37: #{tpu_custom_call.1} parent=19 // pred_check
          %p345 = pneg %p162
        $region38: #{tpu_custom_call.1} parent=19 // pred_check_branch
          %347 = sbr.rel (%p345) target = $region40
        $region39: #{tpu_custom_call.1} parent=19 // pred_region
          %p348 = scmp.lt.s32.totalorder %s17, 1
          %s349 = scalar_select %p348, %s17, 1
          %s350 = scalar_lea.vmem %s5, %s349
        $region40: #{tpu_custom_call.1} parent=19 // pred_fallthru
          _
        // Predicated region
        $region41: #{tpu_custom_call.1} parent=19 // pred_check
          %p351 = pneg %p188
        $region42: #{tpu_custom_call.1} parent=19 // pred_check_branch
          %353 = sbr.rel (%p351) target = $region44
        $region43: #{tpu_custom_call.1} parent=19 // pred_region
          %p354 = scmp.lt.s32.totalorder %s17, 1
          %s355 = scalar_select %p354, %s17, 1
          %s356 = smul.addr %s355, 4
          %s357 = smul.addr %s356, 4
          %s358 = scalar_lea.vmem %s6, %s357
        $region44: #{tpu_custom_call.1} parent=19 // pred_fallthru
          _
        // Predicated region
        $region45: #{tpu_custom_call.1} parent=19 // pred_check
          %p359 = pneg %p214
        $region46: #{tpu_custom_call.1} parent=19 // pred_check_branch
          %361 = sbr.rel (%p359) target = $region48
        $region47: #{tpu_custom_call.1} parent=19 // pred_region
          %p362 = scmp.lt.s32.totalorder %s17, 1
          %s363 = scalar_select %p362, %s17, 1
          %s364 = scalar_lea.vmem %s7, %s363
        $region48: #{tpu_custom_call.1} parent=19 // pred_fallthru
          _
        // Predicated region
        $region49: #{tpu_custom_call.1} parent=19 // pred_check
          %p365 = pneg %p240
        $region50: #{tpu_custom_call.1} parent=19 // pred_check_branch
          %367 = sbr.rel (%p365) target = $region52
        $region51: #{tpu_custom_call.1} parent=19 // pred_region
          %p368 = scmp.lt.s32.totalorder %s17, 1
          %s369 = scalar_select %p368, %s17, 1
          %s370 = smul.addr %s369, 16
          %s371 = smul.addr %s370, 4
          %s372 = scalar_lea.vmem %s8, %s371
        $region52: #{tpu_custom_call.1} parent=19 // pred_fallthru
          _
        // Predicated region
        $region53: #{tpu_custom_call.1} parent=19 // pred_check
          %p373 = pneg %p266
        $region54: #{tpu_custom_call.1} parent=19 // pred_check_branch
          %375 = sbr.rel (%p373) target = $region56
        $region55: #{tpu_custom_call.1} parent=19 // pred_region
          %p376 = scmp.lt.s32.totalorder %s17, 1
          %s377 = scalar_select %p376, %s17, 1
          %s378 = scalar_lea.vmem %s9, %s377
        $region56: #{tpu_custom_call.1} parent=19 // pred_fallthru
          _
      $region20: #{tpu_custom_call.1} parent=5 // pred_fallthru
        _
      %p379 = scmp.le.s32.totalorder 1, %s17
      %p380 = scmp.lt.s32.totalorder %s17, 3
      %p381 = pnand %p379, %p380
      %p382 = pneg %p381
      // Predicated region
      $region57: #{tpu_custom_call.1} parent=5 // pred_check
        _
      $region58: #{tpu_custom_call.1} parent=5 // pred_check_branch
        %384 = sbr.rel (%p381) target = $region60
      $region59: #{tpu_custom_call.1} parent=5 // pred_region
        %s385 = ssub.s32 %s17, 1
        %p386 = pneg %p38
        %p387 = pneg %p35
        %p388 = scmp.lt.s32.totalorder %s22, 1
        %s389 = scalar_select %p388, %s22, 1
        %s390 = scalar_lea.vmem %s1, %s389
        %p391 = pneg %p64
        %p392 = pneg %p61
        %p393 = scmp.lt.s32.totalorder %s22, 1
        %s394 = scalar_select %p393, %s22, 1
        %s395 = smul.addr %s394, 4
        %s396 = smul.addr %s395, 4
        %s397 = scalar_lea.vmem %s2, %s396
        %p398 = pneg %p90
        %p399 = pneg %p87
        %p400 = scmp.lt.s32.totalorder %s22, 1
        %s401 = scalar_select %p400, %s22, 1
        %s402 = smul.addr %s401, 4
        %s403 = smul.addr %s402, 4
        %s404 = scalar_lea.vmem %s3, %s403
        %p405 = pneg %p116
        %p406 = pneg %p113
        %p407 = scmp.lt.s32.totalorder %s22, 1
        %s408 = scalar_select %p407, %s22, 1
        %s409 = smul.addr %s408, 4
        %s410 = smul.addr %s409, 4
        %s411 = scalar_lea.vmem %s4, %s410
        %p412 = pneg %p142
        %p413 = pneg %p139
        %p414 = scmp.lt.s32.totalorder %s22, 1
        %s415 = scalar_select %p414, %s22, 1
        %s416 = scalar_lea.vmem %s5, %s415
        %p417 = pneg %p168
        %p418 = pneg %p165
        %p419 = scmp.lt.s32.totalorder %s22, 1
        %s420 = scalar_select %p419, %s22, 1
        %s421 = smul.addr %s420, 4
        %s422 = smul.addr %s421, 4
        %s423 = scalar_lea.vmem %s6, %s422
        %p424 = pneg %p194
        %p425 = pneg %p191
        %p426 = scmp.lt.s32.totalorder %s22, 1
        %s427 = scalar_select %p426, %s22, 1
        %s428 = scalar_lea.vmem %s7, %s427
        %p429 = pneg %p220
        %p430 = pneg %p217
        %p431 = scmp.lt.s32.totalorder %s22, 1
        %s432 = scalar_select %p431, %s22, 1
        %s433 = smul.addr %s432, 16
        %s434 = smul.addr %s433, 4
        %s435 = scalar_lea.vmem %s8, %s434
        %p436 = pneg %p246
        %p437 = pneg %p243
        %p438 = scmp.lt.s32.totalorder %s22, 1
        %s439 = scalar_select %p438, %s22, 1
        %s440 = scalar_lea.vmem %s9, %s439
        %p441 = pneg %p272
        %p442 = pneg %p269
        %p443 = pneg %p293
        %p444 = pneg %p290
        %p445 = scmp.lt.s32.totalorder %s22, 1
        %s446 = scalar_select %p445, %s22, 1
        %s447 = scalar_lea.vmem %s1, %s446
        %p448 = scmp.lt.s32.totalorder %s22, 1
        %s449 = scalar_select %p448, %s22, 1
        %s450 = smul.addr %s449, 4
        %s451 = smul.addr %s450, 4
        %s452 = scalar_lea.vmem %s2, %s451
        %p453 = scmp.lt.s32.totalorder %s22, 1
        %s454 = scalar_select %p453, %s22, 1
        %s455 = smul.addr %s454, 4
        %s456 = smul.addr %s455, 4
        %s457 = scalar_lea.vmem %s3, %s456
        %p458 = scmp.lt.s32.totalorder %s22, 1
        %s459 = scalar_select %p458, %s22, 1
        %s460 = smul.addr %s459, 4
        %s461 = smul.addr %s460, 4
        %s462 = scalar_lea.vmem %s4, %s461
        %p463 = scmp.lt.s32.totalorder %s22, 1
        %s464 = scalar_select %p463, %s22, 1
        %s465 = scalar_lea.vmem %s5, %s464
        %p466 = scmp.lt.s32.totalorder %s22, 1
        %s467 = scalar_select %p466, %s22, 1
        %s468 = smul.addr %s467, 4
        %s469 = smul.addr %s468, 4
        %s470 = scalar_lea.vmem %s6, %s469
        %p471 = scmp.lt.s32.totalorder %s22, 1
        %s472 = scalar_select %p471, %s22, 1
        %s473 = scalar_lea.vmem %s7, %s472
        %p474 = scmp.lt.s32.totalorder %s22, 1
        %s475 = scalar_select %p474, %s22, 1
        %s476 = smul.addr %s475, 16
        %s477 = smul.addr %s476, 4
        %s478 = scalar_lea.vmem %s8, %s477
        %p479 = scmp.lt.s32.totalorder %s22, 1
        %s480 = scalar_select %p479, %s22, 1
        %s481 = scalar_lea.vmem %s9, %s480
        %p483 = scmp.eq.s32.totalorder %s22, 0
        // Predicated region
        $region61: #{tpu_custom_call.1} parent=59 // pred_check
          %p484 = pneg %p483
        $region62: #{tpu_custom_call.1} parent=59 // pred_check_branch
          %486 = sbr.rel (%p484) target = $region64
        $region63: #{tpu_custom_call.1} parent=59 // pred_region
          %v487 = vld [vmem:[%s0] sm:$0xff]
          %v488 = vld [vmem:[%s0 + $0x8] sm:$0xff]
          %vm489 = vcmask 261120
          %490 = vst.msk [vmem:[#allocation3] sm:$0xff] %vm489, %v487
          %491 = vst.msk [vmem:[#allocation3 + $0x8] sm:$0xff] %vm489, %v488
        $region64: #{tpu_custom_call.1} parent=59 // pred_fallthru
          _
        %v492 = vld [vmem:[#allocation3] sm:$0xff]
        %v493 = vld [vmem:[#allocation3 + $0x8] sm:$0xff]
        %v494 = vld [vmem:[%s447] sm:$0x1]
        %vm495 = vcmask 261120
        %v496 = vsel %vm495, %v492, 0.0
        %497 = vadd.xlane.f32.xlu0 %v496
        %v498 = vpop.xlane.xlu0 %497
        %v499 = vsel %vm495, %v493, 0.0
        %500 = vadd.xlane.f32.xlu0 %v499
        %v501 = vpop.xlane.xlu0 %500
        %v502 = vrcp.pop 32.0
        %v503 = vmul.f32 32.0, %v502
        %v504 = vsub.f32 1.0, %v503
        %v505 = vmul.f32 %v502, %v504
        %v506 = vadd.f32 %v502, %v505
        %vm507 = vweird.f32 %v502
        %v508 = vsel %vm507, %v502, %v506
        %v509 = vmul.f32 %v498, %v508
        %v510 = vmul.f32 %v501, %v508
        %v511 = vsub.f32 %v492, %v509
        %v512 = vsub.f32 %v493, %v510
        %v513 = vmul.f32 %v511, %v511
        %v514 = vmul.f32 %v512, %v512
        %v515 = vsel %vm495, %v513, 0.0
        %516 = vadd.xlane.f32.xlu0 %v515
        %v517 = vpop.xlane.xlu0 %516
        %v518 = vsel %vm495, %v514, 0.0
        %519 = vadd.xlane.f32.xlu0 %v518
        %v520 = vpop.xlane.xlu0 %519
        %v521 = vmul.f32 %v517, %v508
        %v522 = vmul.f32 %v520, %v508
        %v523 = vadd.f32 %v521, 1e-05
        %v524 = vadd.f32 %v522, 1e-05
        %v525 = vrsqrt.pop %v523
        %v526 = vmul.f32 %v525, %v523
        %v527 = vmul.f32 %v526, %v525
        %v528 = vmul.f32 0.5, %v527
        %v529 = vsub.f32 1.5, %v528
        %v530 = vmul.f32 %v525, %v529
        %vm531 = vweird.f32 %v523
        %vm532 = vweird.f32 %v525
        %vm533 = vmor %vm531, %vm532
        %v534 = vsel %vm533, %v525, %v530
        %v535 = vrsqrt.pop %v524
        %v536 = vmul.f32 %v535, %v524
        %v537 = vmul.f32 %v536, %v535
        %v538 = vmul.f32 0.5, %v537
        %v539 = vsub.f32 1.5, %v538
        %v540 = vmul.f32 %v535, %v539
        %vm541 = vweird.f32 %v524
        %vm542 = vweird.f32 %v535
        %vm543 = vmor %vm541, %vm542
        %v544 = vsel %vm543, %v535, %v540
        %v545 = vmul.f32 %v511, %v534
        %v546 = vmul.f32 %v512, %v544
        %v548 = vperm.slane %v494, 0
        %v550 = vmul.f32 %v545, %v548
        %v551 = vmul.f32 %v546, %v548
        %v552 = vpack.c.bf16 %v551, %v550
        %v553 = vld [vmem:[%s452] sm:$0xf]
        %v554 = vld [vmem:[%s452 + $0x4] sm:$0xf]
        %v555 = vld [vmem:[%s452 + $0x8] sm:$0xf]
        %v556 = vld [vmem:[%s452 + $0xc] sm:$0xf]
        %v561 = vunpack.c.l.b16 %v553
        %v562 = vunpack.c.l.b16 %v554
        %v563 = vunpack.c.l.b16 %v555
        %v564 = vunpack.c.l.b16 %v556
        %v565 = vpack.c.b16 %v562, %v561
        %v566 = vpack.c.b16 %v564, %v563
        %v570 = vsel %vm495, %v552, 0
        %572 = vmatpush.bf16.msra.mxu0 0
        %573 = vmatpush.bf16.msra.mxu0 0
        %574 = vmatpush.bf16.msra.mxu0 0
        %575 = vmatpush.bf16.msra.mxu0 0
        %576 = vmatpush.bf16.msra.mxu0 0
        %577 = vmatpush.bf16.msra.mxu0 0
        %578 = vmatpush.bf16.msra.mxu0 %v566
        %579 = vmatpush.bf16.msra.mxu0 %v565
        %580 = vmatmul.bf16.gmra.mxu0 %v570
        %v581 = vpop.f32.mrf.mxu0
        %v582 = vadd.f32 0.0, %v581
        %v583 = vpop.f32.mrf.mxu0
        %v584 = vadd.f32 0.0, %v583
        %585 = vdwg.mxu0
        %v586 = vmul.f32 %v582, 0.35355338
        %v587 = vmul.f32 %v584, 0.35355338
        %v588 = vpack.c.bf16 %v493, %v492
        %v589 = vld [vmem:[%s457] sm:$0xf]
        %v590 = vld [vmem:[%s457 + $0x4] sm:$0xf]
        %v591 = vld [vmem:[%s457 + $0x8] sm:$0xf]
        %v592 = vld [vmem:[%s457 + $0xc] sm:$0xf]
        %v597 = vunpack.c.l.b16 %v589
        %v598 = vunpack.c.l.b16 %v590
        %v599 = vunpack.c.l.b16 %v591
        %v600 = vunpack.c.l.b16 %v592
        %v601 = vpack.c.b16 %v598, %v597
        %v602 = vpack.c.b16 %v600, %v599
        %v606 = vsel %vm495, %v588, 0
        %608 = vmatpush.bf16.msra.mxu0 0
        %609 = vmatpush.bf16.msra.mxu0 0
        %610 = vmatpush.bf16.msra.mxu0 0
        %611 = vmatpush.bf16.msra.mxu0 0
        %612 = vmatpush.bf16.msra.mxu0 0
        %613 = vmatpush.bf16.msra.mxu0 0
        %614 = vmatpush.bf16.msra.mxu0 %v602
        %615 = vmatpush.bf16.msra.mxu0 %v601
        %616 = vmatmul.bf16.gmra.mxu0 %v606
        %v617 = vpop.f32.mrf.mxu0
        %v618 = vadd.f32 0.0, %v617
        %v619 = vpop.f32.mrf.mxu0
        %v620 = vadd.f32 0.0, %v619
        %621 = vdwg.mxu0
        %v622 = vpack.c.bf16 %v618, %v618
        %v623 = vpack.c.bf16 %v620, %v620
        %v624 = vpack.c.bf16 %v586, %v586
        %v625 = vpack.c.bf16 %v587, %v587
        %vm626 = vcmask 64512
        %v628 = vsel %vm626, %v624, 0
        %v631 = vsel %vm626, %v622, 0
        %633 = vmatpush.bf16.xpose.msra.mxu0 0
        %634 = vmatpush.bf16.xpose.msra.mxu0 0
        %635 = vmatpush.bf16.xpose.msra.mxu0 0
        %636 = vmatpush.bf16.xpose.msra.mxu0 0
        %637 = vmatpush.bf16.xpose.msra.mxu0 0
        %638 = vmatpush.bf16.xpose.msra.mxu0 0
        %639 = vmatpush.bf16.xpose.msra.mxu0 0
        %640 = vmatpush.bf16.xpose.msra.mxu0 %v631
        %641 = vmatmul.bf16.gmra.mxu0 %v628
        %v642 = vpop.f32.mrf.mxu0
        %v643 = vadd.f32 0.0, %v642
        %v644 = vpop.f32.mrf.mxu0
        %645 = vdwg.mxu0
        %v647 = vsel %vm626, %v625, 0
        %v650 = vsel %vm626, %v623, 0
        %652 = vmatpush.bf16.xpose.msra.mxu0 0
        %653 = vmatpush.bf16.xpose.msra.mxu0 0
        %654 = vmatpush.bf16.xpose.msra.mxu0 0
        %655 = vmatpush.bf16.xpose.msra.mxu0 0
        %656 = vmatpush.bf16.xpose.msra.mxu0 0
        %657 = vmatpush.bf16.xpose.msra.mxu0 0
        %658 = vmatpush.bf16.xpose.msra.mxu0 0
        %659 = vmatpush.bf16.xpose.msra.mxu0 %v650
        %660 = vmatmul.bf16.gmra.mxu0 %v647
        %v661 = vpop.f32.mrf.mxu0
        %v662 = vadd.f32 0.0, %v661
        %v663 = vpop.f32.mrf.mxu0
        %664 = vdwg.mxu0
        %v665 = vsel %vm626, %v643, -inf
        %666 = vmax.xlane.f32.xlu0 %v665
        %v667 = vpop.xlane.xlu0 %666
        %v668 = vsel %vm626, %v662, -inf
        %669 = vmax.xlane.f32.xlu0 %v668
        %v670 = vpop.xlane.xlu0 %669
        %v671 = vsub.f32 %v643, %v667
        %v672 = vsub.f32 %v662, %v670
        %v673 = vmul.f32 %v671, 1.442695
        %v674 = vpow.pop %v673
        %v675 = vmul.f32 %v672, 1.442695
        %v676 = vpow.pop %v675
        %v677 = vsel %vm626, %v674, 0.0
        %678 = vadd.xlane.f32.xlu0 %v677
        %v679 = vpop.xlane.xlu0 %678
        %v680 = vsel %vm626, %v676, 0.0
        %681 = vadd.xlane.f32.xlu0 %v680
        %v682 = vpop.xlane.xlu0 %681
        %v683 = vrcp.pop %v679
        %v684 = vrcp.pop %v682
        %v685 = vmul.f32 %v674, %v683
        %v686 = vmul.f32 %v676, %v684
        %v687 = vpack.c.bf16 %v685, %v685
        %v688 = vpack.c.bf16 %v686, %v686
        %v690 = vunpack.c.l.b16 %v622
        %v691 = vpack.c.b16 %v690, %v690
        %692 = vrot.lane.b32.xlu0 %v691, 120
        %v693 = vpop.permute.xlu0 %692
        %v695 = vsel %vm626, %v687, 0
        %vm697 = vcmask 1043456
        %v699 = vsel %vm697, %v693, 0
        %701 = vmatpush.bf16.msra.mxu0 0
        %702 = vmatpush.bf16.msra.mxu0 0
        %703 = vmatpush.bf16.msra.mxu0 0
        %704 = vmatpush.bf16.msra.mxu0 0
        %705 = vmatpush.bf16.msra.mxu0 0
        %706 = vmatpush.bf16.msra.mxu0 0
        %707 = vmatpush.bf16.msra.mxu0 0
        %708 = vmatpush.bf16.msra.mxu0 %v699
        %709 = vmatmul.bf16.gmra.mxu0 %v695
        %v710 = vpop.f32.mrf.mxu0
        %v711 = vadd.f32 0.0, %v710
        %v712 = vpop.f32.mrf.mxu0
        %713 = vdwg.mxu0
        %v715 = vunpack.c.l.b16 %v623
        %v716 = vpack.c.b16 %v715, %v715
        %717 = vrot.lane.b32.xlu0 %v716, 120
        %v718 = vpop.permute.xlu0 %717
        %v720 = vsel %vm626, %v688, 0
        %v723 = vsel %vm697, %v718, 0
        %725 = vmatpush.bf16.msra.mxu0 0
        %726 = vmatpush.bf16.msra.mxu0 0
        %727 = vmatpush.bf16.msra.mxu0 0
        %728 = vmatpush.bf16.msra.mxu0 0
        %729 = vmatpush.bf16.msra.mxu0 0
        %730 = vmatpush.bf16.msra.mxu0 0
        %731 = vmatpush.bf16.msra.mxu0 0
        %732 = vmatpush.bf16.msra.mxu0 %v723
        %733 = vmatmul.bf16.gmra.mxu0 %v720
        %v734 = vpop.f32.mrf.mxu0
        %v735 = vadd.f32 0.0, %v734
        %v736 = vpop.f32.mrf.mxu0
        %737 = vdwg.mxu0
        %738 = vst.msk [vmem:[#allocation2] sm:$0xff] %vm626, %v711
        %739 = vst.msk [vmem:[#allocation2 + $0x8] sm:$0xff] %vm626, %v735
        %v741 = vunpack.c.l.b16 %v624
        %v742 = vpack.c.b16 %v741, %v741
        %743 = vrot.lane.b32.xlu0 %v742, 120
        %v744 = vpop.permute.xlu0 %743
        %v746 = vsel %vm626, %v744, 0
        %748 = vmatpush.bf16.xpose.msra.mxu0 0
        %749 = vmatpush.bf16.xpose.msra.mxu0 0
        %750 = vmatpush.bf16.xpose.msra.mxu0 0
        %751 = vmatpush.bf16.xpose.msra.mxu0 0
        %752 = vmatpush.bf16.xpose.msra.mxu0 0
        %753 = vmatpush.bf16.xpose.msra.mxu0 0
        %754 = vmatpush.bf16.xpose.msra.mxu0 0
        %755 = vmatpush.bf16.xpose.msra.mxu0 %v631
        %756 = vmatmul.bf16.gmra.mxu0 %v746
        %v757 = vpop.f32.mrf.mxu0
        %v758 = vadd.f32 0.0, %v757
        %v759 = vpop.f32.mrf.mxu0
        %760 = vdwg.mxu0
        %v762 = vunpack.c.l.b16 %v625
        %v763 = vpack.c.b16 %v762, %v762
        %764 = vrot.lane.b32.xlu0 %v763, 120
        %v765 = vpop.permute.xlu0 %764
        %v767 = vsel %vm626, %v765, 0
        %769 = vmatpush.bf16.xpose.msra.mxu0 0
        %770 = vmatpush.bf16.xpose.msra.mxu0 0
        %771 = vmatpush.bf16.xpose.msra.mxu0 0
        %772 = vmatpush.bf16.xpose.msra.mxu0 0
        %773 = vmatpush.bf16.xpose.msra.mxu0 0
        %774 = vmatpush.bf16.xpose.msra.mxu0 0
        %775 = vmatpush.bf16.xpose.msra.mxu0 0
        %776 = vmatpush.bf16.xpose.msra.mxu0 %v650
        %777 = vmatmul.bf16.gmra.mxu0 %v767
        %v778 = vpop.f32.mrf.mxu0
        %v779 = vadd.f32 0.0, %v778
        %v780 = vpop.f32.mrf.mxu0
        %781 = vdwg.mxu0
        %v782 = vsel %vm626, %v758, -inf
        %783 = vmax.xlane.f32.xlu0 %v782
        %v784 = vpop.xlane.xlu0 %783
        %v785 = vsel %vm626, %v779, -inf
        %786 = vmax.xlane.f32.xlu0 %v785
        %v787 = vpop.xlane.xlu0 %786
        %v788 = vsub.f32 %v758, %v784
        %v789 = vsub.f32 %v779, %v787
        %v790 = vmul.f32 %v788, 1.442695
        %v791 = vpow.pop %v790
        %v792 = vmul.f32 %v789, 1.442695
        %v793 = vpow.pop %v792
        %v794 = vsel %vm626, %v791, 0.0
        %795 = vadd.xlane.f32.xlu0 %v794
        %v796 = vpop.xlane.xlu0 %795
        %v797 = vsel %vm626, %v793, 0.0
        %798 = vadd.xlane.f32.xlu0 %v797
        %v799 = vpop.xlane.xlu0 %798
        %v800 = vrcp.pop %v796
        %v801 = vrcp.pop %v799
        %v802 = vmul.f32 %v791, %v800
        %v803 = vmul.f32 %v793, %v801
        %v804 = vpack.c.bf16 %v802, %v802
        %v805 = vpack.c.bf16 %v803, %v803
        %v807 = vsel %vm626, %v804, 0
        %809 = vmatpush.bf16.msra.mxu0 0
        %810 = vmatpush.bf16.msra.mxu0 0
        %811 = vmatpush.bf16.msra.mxu0 0
        %812 = vmatpush.bf16.msra.mxu0 0
        %813 = vmatpush.bf16.msra.mxu0 0
        %814 = vmatpush.bf16.msra.mxu0 0
        %815 = vmatpush.bf16.msra.mxu0 0
        %816 = vmatpush.bf16.msra.mxu0 %v699
        %817 = vmatmul.bf16.gmra.mxu0 %v807
        %v818 = vpop.f32.mrf.mxu0
        %v819 = vadd.f32 0.0, %v818
        %v820 = vpop.f32.mrf.mxu0
        %821 = vdwg.mxu0
        %v823 = vsel %vm626, %v805, 0
        %825 = vmatpush.bf16.msra.mxu0 0
        %826 = vmatpush.bf16.msra.mxu0 0
        %827 = vmatpush.bf16.msra.mxu0 0
        %828 = vmatpush.bf16.msra.mxu0 0
        %829 = vmatpush.bf16.msra.mxu0 0
        %830 = vmatpush.bf16.msra.mxu0 0
        %831 = vmatpush.bf16.msra.mxu0 0
        %832 = vmatpush.bf16.msra.mxu0 %v723
        %833 = vmatmul.bf16.gmra.mxu0 %v823
        %v834 = vpop.f32.mrf.mxu0
        %v835 = vadd.f32 0.0, %v834
        %v836 = vpop.f32.mrf.mxu0
        %837 = vdwg.mxu0
        %840 = vrot.lane.b32.xlu0 %v819, 8
        %v841 = vpop.permute.xlu0 %840
        %842 = vrot.lane.b32.xlu0 %v835, 8
        %v843 = vpop.permute.xlu0 %842
        %vm846 = vcmask 130112
        %847 = vst.msk [vmem:[#allocation2] sm:$0xff] %vm846, %v841
        %848 = vst.msk [vmem:[#allocation2 + $0x8] sm:$0xff] %vm846, %v843
        %849 = vrot.lane.b32.xlu0 %v742, 112
        %v850 = vpop.permute.xlu0 %849
        %v852 = vsel %vm626, %v850, 0
        %854 = vmatpush.bf16.xpose.msra.mxu0 0
        %855 = vmatpush.bf16.xpose.msra.mxu0 0
        %856 = vmatpush.bf16.xpose.msra.mxu0 0
        %857 = vmatpush.bf16.xpose.msra.mxu0 0
        %858 = vmatpush.bf16.xpose.msra.mxu0 0
        %859 = vmatpush.bf16.xpose.msra.mxu0 0
        %860 = vmatpush.bf16.xpose.msra.mxu0 0
        %861 = vmatpush.bf16.xpose.msra.mxu0 %v631
        %862 = vmatmul.bf16.gmra.mxu0 %v852
        %v863 = vpop.f32.mrf.mxu0
        %v864 = vadd.f32 0.0, %v863
        %v865 = vpop.f32.mrf.mxu0
        %866 = vdwg.mxu0
        %867 = vrot.lane.b32.xlu0 %v763, 112
        %v868 = vpop.permute.xlu0 %867
        %v870 = vsel %vm626, %v868, 0
        %872 = vmatpush.bf16.xpose.msra.mxu0 0
        %873 = vmatpush.bf16.xpose.msra.mxu0 0
        %874 = vmatpush.bf16.xpose.msra.mxu0 0
        %875 = vmatpush.bf16.xpose.msra.mxu0 0
        %876 = vmatpush.bf16.xpose.msra.mxu0 0
        %877 = vmatpush.bf16.xpose.msra.mxu0 0
        %878 = vmatpush.bf16.xpose.msra.mxu0 0
        %879 = vmatpush.bf16.xpose.msra.mxu0 %v650
        %880 = vmatmul.bf16.gmra.mxu0 %v870
        %v881 = vpop.f32.mrf.mxu0
        %v882 = vadd.f32 0.0, %v881
        %v883 = vpop.f32.mrf.mxu0
        %884 = vdwg.mxu0
        %v885 = vsel %vm626, %v864, -inf
        %886 = vmax.xlane.f32.xlu0 %v885
        %v887 = vpop.xlane.xlu0 %886
        %v888 = vsel %vm626, %v882, -inf
        %889 = vmax.xlane.f32.xlu0 %v888
        %v890 = vpop.xlane.xlu0 %889
        %v891 = vsub.f32 %v864, %v887
        %v892 = vsub.f32 %v882, %v890
        %v893 = vmul.f32 %v891, 1.442695
        %v894 = vpow.pop %v893
        %v895 = vmul.f32 %v892, 1.442695
        %v896 = vpow.pop %v895
        %v897 = vsel %vm626, %v894, 0.0
        %898 = vadd.xlane.f32.xlu0 %v897
        %v899 = vpop.xlane.xlu0 %898
        %v900 = vsel %vm626, %v896, 0.0
        %901 = vadd.xlane.f32.xlu0 %v900
        %v902 = vpop.xlane.xlu0 %901
        %v903 = vrcp.pop %v899
        %v904 = vrcp.pop %v902
        %v905 = vmul.f32 %v894, %v903
        %v906 = vmul.f32 %v896, %v904
        %v907 = vpack.c.bf16 %v905, %v905
        %v908 = vpack.c.bf16 %v906, %v906
        %v910 = vsel %vm626, %v907, 0
        %912 = vmatpush.bf16.msra.mxu0 0
        %913 = vmatpush.bf16.msra.mxu0 0
        %914 = vmatpush.bf16.msra.mxu0 0
        %915 = vmatpush.bf16.msra.mxu0 0
        %916 = vmatpush.bf16.msra.mxu0 0
        %917 = vmatpush.bf16.msra.mxu0 0
        %918 = vmatpush.bf16.msra.mxu0 0
        %919 = vmatpush.bf16.msra.mxu0 %v699
        %920 = vmatmul.bf16.gmra.mxu0 %v910
        %v921 = vpop.f32.mrf.mxu0
        %v922 = vadd.f32 0.0, %v921
        %v923 = vpop.f32.mrf.mxu0
        %924 = vdwg.mxu0
        %v926 = vsel %vm626, %v908, 0
        %928 = vmatpush.bf16.msra.mxu0 0
        %929 = vmatpush.bf16.msra.mxu0 0
        %930 = vmatpush.bf16.msra.mxu0 0
        %931 = vmatpush.bf16.msra.mxu0 0
        %932 = vmatpush.bf16.msra.mxu0 0
        %933 = vmatpush.bf16.msra.mxu0 0
        %934 = vmatpush.bf16.msra.mxu0 0
        %935 = vmatpush.bf16.msra.mxu0 %v723
        %936 = vmatmul.bf16.gmra.mxu0 %v926
        %v937 = vpop.f32.mrf.mxu0
        %v938 = vadd.f32 0.0, %v937
        %v939 = vpop.f32.mrf.mxu0
        %940 = vdwg.mxu0
        %943 = vrot.lane.b32.xlu0 %v922, 16
        %v944 = vpop.permute.xlu0 %943
        %945 = vrot.lane.b32.xlu0 %v938, 16
        %v946 = vpop.permute.xlu0 %945
        %vm949 = vcmask 195712
        %950 = vst.msk [vmem:[#allocation2] sm:$0xff] %vm949, %v944
        %951 = vst.msk [vmem:[#allocation2 + $0x8] sm:$0xff] %vm949, %v946
        %952 = vrot.lane.b32.xlu0 %v742, 104
        %v953 = vpop.permute.xlu0 %952
        %v955 = vsel %vm626, %v953, 0
        %957 = vmatpush.bf16.xpose.msra.mxu0 0
        %958 = vmatpush.bf16.xpose.msra.mxu0 0
        %959 = vmatpush.bf16.xpose.msra.mxu0 0
        %960 = vmatpush.bf16.xpose.msra.mxu0 0
        %961 = vmatpush.bf16.xpose.msra.mxu0 0
        %962 = vmatpush.bf16.xpose.msra.mxu0 0
        %963 = vmatpush.bf16.xpose.msra.mxu0 0
        %964 = vmatpush.bf16.xpose.msra.mxu0 %v631
        %965 = vmatmul.bf16.gmra.mxu0 %v955
        %v966 = vpop.f32.mrf.mxu0
        %v967 = vadd.f32 0.0, %v966
        %v968 = vpop.f32.mrf.mxu0
        %969 = vdwg.mxu0
        %970 = vrot.lane.b32.xlu0 %v763, 104
        %v971 = vpop.permute.xlu0 %970
        %v973 = vsel %vm626, %v971, 0
        %975 = vmatpush.bf16.xpose.msra.mxu0 0
        %976 = vmatpush.bf16.xpose.msra.mxu0 0
        %977 = vmatpush.bf16.xpose.msra.mxu0 0
        %978 = vmatpush.bf16.xpose.msra.mxu0 0
        %979 = vmatpush.bf16.xpose.msra.mxu0 0
        %980 = vmatpush.bf16.xpose.msra.mxu0 0
        %981 = vmatpush.bf16.xpose.msra.mxu0 0
        %982 = vmatpush.bf16.xpose.msra.mxu0 %v650
        %983 = vmatmul.bf16.gmra.mxu0 %v973
        %v984 = vpop.f32.mrf.mxu0
        %v985 = vadd.f32 0.0, %v984
        %v986 = vpop.f32.mrf.mxu0
        %987 = vdwg.mxu0
        %v988 = vsel %vm626, %v967, -inf
        %989 = vmax.xlane.f32.xlu0 %v988
        %v990 = vpop.xlane.xlu0 %989
        %v991 = vsel %vm626, %v985, -inf
        %992 = vmax.xlane.f32.xlu0 %v991
        %v993 = vpop.xlane.xlu0 %992
        %v994 = vsub.f32 %v967, %v990
        %v995 = vsub.f32 %v985, %v993
        %v996 = vmul.f32 %v994, 1.442695
        %v997 = vpow.pop %v996
        %v998 = vmul.f32 %v995, 1.442695
        %v999 = vpow.pop %v998
        %v1000 = vsel %vm626, %v997, 0.0
        %1001 = vadd.xlane.f32.xlu0 %v1000
        %v1002 = vpop.xlane.xlu0 %1001
        %v1003 = vsel %vm626, %v999, 0.0
        %1004 = vadd.xlane.f32.xlu0 %v1003
        %v1005 = vpop.xlane.xlu0 %1004
        %v1006 = vrcp.pop %v1002
        %v1007 = vrcp.pop %v1005
        %v1008 = vmul.f32 %v997, %v1006
        %v1009 = vmul.f32 %v999, %v1007
        %v1010 = vpack.c.bf16 %v1008, %v1008
        %v1011 = vpack.c.bf16 %v1009, %v1009
        %v1013 = vsel %vm626, %v1010, 0
        %1015 = vmatpush.bf16.msra.mxu0 0
        %1016 = vmatpush.bf16.msra.mxu0 0
        %1017 = vmatpush.bf16.msra.mxu0 0
        %1018 = vmatpush.bf16.msra.mxu0 0
        %1019 = vmatpush.bf16.msra.mxu0 0
        %1020 = vmatpush.bf16.msra.mxu0 0
        %1021 = vmatpush.bf16.msra.mxu0 0
        %1022 = vmatpush.bf16.msra.mxu0 %v699
        %1023 = vmatmul.bf16.gmra.mxu0 %v1013
        %v1024 = vpop.f32.mrf.mxu0
        %v1025 = vadd.f32 0.0, %v1024
        %v1026 = vpop.f32.mrf.mxu0
        %1027 = vdwg.mxu0
        %v1029 = vsel %vm626, %v1011, 0
        %1031 = vmatpush.bf16.msra.mxu0 0
        %1032 = vmatpush.bf16.msra.mxu0 0
        %1033 = vmatpush.bf16.msra.mxu0 0
        %1034 = vmatpush.bf16.msra.mxu0 0
        %1035 = vmatpush.bf16.msra.mxu0 0
        %1036 = vmatpush.bf16.msra.mxu0 0
        %1037 = vmatpush.bf16.msra.mxu0 0
        %1038 = vmatpush.bf16.msra.mxu0 %v723
        %1039 = vmatmul.bf16.gmra.mxu0 %v1029
        %v1040 = vpop.f32.mrf.mxu0
        %v1041 = vadd.f32 0.0, %v1040
        %v1042 = vpop.f32.mrf.mxu0
        %1043 = vdwg.mxu0
        %1046 = vrot.lane.b32.xlu0 %v1025, 24
        %v1047 = vpop.permute.xlu0 %1046
        %1048 = vrot.lane.b32.xlu0 %v1041, 24
        %v1049 = vpop.permute.xlu0 %1048
        %vm1052 = vcmask 261312
        %1053 = vst.msk [vmem:[#allocation2] sm:$0xff] %vm1052, %v1047
        %1054 = vst.msk [vmem:[#allocation2 + $0x8] sm:$0xff] %vm1052, %v1049
        %v1055 = vld [vmem:[#allocation2] sm:$0xff]
        %v1056 = vld [vmem:[#allocation2 + $0x8] sm:$0xff]
        %v1057 = vpack.c.bf16 %v1056, %v1055
        %v1058 = vld [vmem:[%s462] sm:$0xf]
        %v1059 = vld [vmem:[%s462 + $0x4] sm:$0xf]
        %v1060 = vld [vmem:[%s462 + $0x8] sm:$0xf]
        %v1061 = vld [vmem:[%s462 + $0xc] sm:$0xf]
        %v1066 = vunpack.c.l.b16 %v1058
        %v1067 = vunpack.c.l.b16 %v1059
        %v1068 = vunpack.c.l.b16 %v1060
        %v1069 = vunpack.c.l.b16 %v1061
        %v1070 = vpack.c.b16 %v1067, %v1066
        %v1071 = vpack.c.b16 %v1069, %v1068
        %v1075 = vsel %vm495, %v1057, 0
        %1077 = vmatpush.bf16.msra.mxu0 0
        %1078 = vmatpush.bf16.msra.mxu0 0
        %1079 = vmatpush.bf16.msra.mxu0 0
        %1080 = vmatpush.bf16.msra.mxu0 0
        %1081 = vmatpush.bf16.msra.mxu0 0
        %1082 = vmatpush.bf16.msra.mxu0 0
        %1083 = vmatpush.bf16.msra.mxu0 %v1071
        %1084 = vmatpush.bf16.msra.mxu0 %v1070
        %1085 = vmatmul.bf16.gmra.mxu0 %v1075
        %v1086 = vpop.f32.mrf.mxu0
        %v1087 = vadd.f32 0.0, %v1086
        %v1088 = vpop.f32.mrf.mxu0
        %v1089 = vadd.f32 0.0, %v1088
        %1090 = vdwg.mxu0
        %v1091 = vadd.f32 %v492, %v1087
        %v1092 = vadd.f32 %v493, %v1089
        %v1093 = vld [vmem:[%s465] sm:$0x1]
        %v1094 = vsel %vm495, %v1091, 0.0
        %1095 = vadd.xlane.f32.xlu0 %v1094
        %v1096 = vpop.xlane.xlu0 %1095
        %v1097 = vsel %vm495, %v1092, 0.0
        %1098 = vadd.xlane.f32.xlu0 %v1097
        %v1099 = vpop.xlane.xlu0 %1098
        %v1100 = vmul.f32 %v1096, %v508
        %v1101 = vmul.f32 %v1099, %v508
        %v1102 = vsub.f32 %v1091, %v1100
        %v1103 = vsub.f32 %v1092, %v1101
        %v1104 = vmul.f32 %v1102, %v1102
        %v1105 = vmul.f32 %v1103, %v1103
        %v1106 = vsel %vm495, %v1104, 0.0
        %1107 = vadd.xlane.f32.xlu0 %v1106
        %v1108 = vpop.xlane.xlu0 %1107
        %v1109 = vsel %vm495, %v1105, 0.0
        %1110 = vadd.xlane.f32.xlu0 %v1109
        %v1111 = vpop.xlane.xlu0 %1110
        %v1112 = vmul.f32 %v1108, %v508
        %v1113 = vmul.f32 %v1111, %v508
        %v1114 = vadd.f32 %v1112, 1e-05
        %v1115 = vadd.f32 %v1113, 1e-05
        %v1116 = vrsqrt.pop %v1114
        %v1117 = vmul.f32 %v1116, %v1114
        %v1118 = vmul.f32 %v1117, %v1116
        %v1119 = vmul.f32 0.5, %v1118
        %v1120 = vsub.f32 1.5, %v1119
        %v1121 = vmul.f32 %v1116, %v1120
        %vm1122 = vweird.f32 %v1114
        %vm1123 = vweird.f32 %v1116
        %vm1124 = vmor %vm1122, %vm1123
        %v1125 = vsel %vm1124, %v1116, %v1121
        %v1126 = vrsqrt.pop %v1115
        %v1127 = vmul.f32 %v1126, %v1115
        %v1128 = vmul.f32 %v1127, %v1126
        %v1129 = vmul.f32 0.5, %v1128
        %v1130 = vsub.f32 1.5, %v1129
        %v1131 = vmul.f32 %v1126, %v1130
        %vm1132 = vweird.f32 %v1115
        %vm1133 = vweird.f32 %v1126
        %vm1134 = vmor %vm1132, %vm1133
        %v1135 = vsel %vm1134, %v1126, %v1131
        %v1136 = vmul.f32 %v1102, %v1125
        %v1137 = vmul.f32 %v1103, %v1135
        %v1139 = vperm.slane %v1093, 0
        %v1141 = vmul.f32 %v1136, %v1139
        %v1142 = vmul.f32 %v1137, %v1139
        %v1143 = vpack.c.bf16 %v1142, %v1141
        %v1144 = vld [vmem:[%s470] sm:$0xf]
        %v1145 = vld [vmem:[%s470 + $0x4] sm:$0xf]
        %v1146 = vld [vmem:[%s470 + $0x8] sm:$0xf]
        %v1147 = vld [vmem:[%s470 + $0xc] sm:$0xf]
        %v1148 = vld [vmem:[%s473] sm:$0x1]
        %v1150 = vperm.slane %v1148, 0
        %v1156 = vunpack.c.l.b16 %v1144
        %v1157 = vunpack.c.l.b16 %v1145
        %v1158 = vunpack.c.l.b16 %v1146
        %v1159 = vunpack.c.l.b16 %v1147
        %v1160 = vpack.c.b16 %v1157, %v1156
        %v1161 = vpack.c.b16 %v1159, %v1158
        %v1165 = vsel %vm495, %v1143, 0
        %1167 = vmatpush.bf16.msra.mxu0 0
        %1168 = vmatpush.bf16.msra.mxu0 0
        %1169 = vmatpush.bf16.msra.mxu0 0
        %1170 = vmatpush.bf16.msra.mxu0 0
        %1171 = vmatpush.bf16.msra.mxu0 0
        %1172 = vmatpush.bf16.msra.mxu0 0
        %1173 = vmatpush.bf16.msra.mxu0 %v1161
        %1174 = vmatpush.bf16.msra.mxu0 %v1160
        %1175 = vmatmul.bf16.gmra.mxu0 %v1165
        %v1176 = vpop.f32.mrf.mxu0
        %v1177 = vadd.f32 %v1150, %v1176
        %v1178 = vpop.f32.mrf.mxu0
        %v1179 = vadd.f32 %v1150, %v1178
        %1180 = vdwg.mxu0
        %v1181 = vmul.f32 %v1177, 0.5
        %v1182 = vmul.f32 %v1179, 0.5
        %v1183 = vmul.f32 %v1177, %v1177
        %v1184 = vmul.f32 %v1179, %v1179
        %v1185 = vmul.f32 %v1183, %v1177
        %v1186 = vmul.f32 %v1184, %v1179
        %v1187 = vmul.f32 %v1185, 0.044715
        %v1188 = vmul.f32 %v1186, 0.044715
        %v1189 = vadd.f32 %v1177, %v1187
        %v1190 = vadd.f32 %v1179, %v1188
        %v1191 = vmul.f32 %v1189, 0.7978846
        %v1192 = vmul.f32 %v1190, 0.7978846
        %v1193 = vtanh.pop %v1191
        %v1194 = vtanh.pop %v1192
        %v1195 = vadd.f32 %v1193, 1.0
        %v1196 = vadd.f32 %v1194, 1.0
        %v1197 = vmul.f32 %v1181, %v1195
        %v1198 = vmul.f32 %v1182, %v1196
        %v1199 = vpack.c.bf16 %v1198, %v1197
        %v1200 = vld [vmem:[%s478] sm:$0xf]
        %v1201 = vld [vmem:[%s478 + $0x4] sm:$0xf]
        %v1202 = vld [vmem:[%s478 + $0x8] sm:$0xf]
        %v1203 = vld [vmem:[%s478 + $0xc] sm:$0xf]
        %v1204 = vld [vmem:[%s478 + $0x10] sm:$0xf]
        %v1205 = vld [vmem:[%s478 + $0x14] sm:$0xf]
        %v1206 = vld [vmem:[%s478 + $0x18] sm:$0xf]
        %v1207 = vld [vmem:[%s478 + $0x1c] sm:$0xf]
        %v1208 = vld [vmem:[%s478 + $0x20] sm:$0xf]
        %v1209 = vld [vmem:[%s478 + $0x24] sm:$0xf]
        %v1210 = vld [vmem:[%s478 + $0x28] sm:$0xf]
        %v1211 = vld [vmem:[%s478 + $0x2c] sm:$0xf]
        %v1212 = vld [vmem:[%s478 + $0x30] sm:$0xf]
        %v1213 = vld [vmem:[%s478 + $0x34] sm:$0xf]
        %v1214 = vld [vmem:[%s478 + $0x38] sm:$0xf]
        %v1215 = vld [vmem:[%s478 + $0x3c] sm:$0xf]
        %v1232 = vunpack.c.l.b16 %v1200
        %v1233 = vunpack.c.l.b16 %v1201
        %v1234 = vunpack.c.l.b16 %v1202
        %v1235 = vunpack.c.l.b16 %v1203
        %v1236 = vunpack.c.l.b16 %v1204
        %v1237 = vunpack.c.l.b16 %v1205
        %v1238 = vunpack.c.l.b16 %v1206
        %v1239 = vunpack.c.l.b16 %v1207
        %v1240 = vunpack.c.l.b16 %v1208
        %v1241 = vunpack.c.l.b16 %v1209
        %v1242 = vunpack.c.l.b16 %v1210
        %v1243 = vunpack.c.l.b16 %v1211
        %v1244 = vunpack.c.l.b16 %v1212
        %v1245 = vunpack.c.l.b16 %v1213
        %v1246 = vunpack.c.l.b16 %v1214
        %v1247 = vunpack.c.l.b16 %v1215
        %v1248 = vpack.c.b16 %v1233, %v1232
        %v1249 = vpack.c.b16 %v1235, %v1234
        %v1250 = vpack.c.b16 %v1237, %v1236
        %v1251 = vpack.c.b16 %v1239, %v1238
        %v1252 = vpack.c.b16 %v1241, %v1240
        %v1253 = vpack.c.b16 %v1243, %v1242
        %v1254 = vpack.c.b16 %v1245, %v1244
        %v1255 = vpack.c.b16 %v1247, %v1246
        %1264 = vmatpush.bf16.msra.mxu0 %v1255
        %1265 = vmatpush.bf16.msra.mxu0 %v1254
        %1266 = vmatpush.bf16.msra.mxu0 %v1253
        %1267 = vmatpush.bf16.msra.mxu0 %v1252
        %1268 = vmatpush.bf16.msra.mxu0 %v1251
        %1269 = vmatpush.bf16.msra.mxu0 %v1250
        %1270 = vmatpush.bf16.msra.mxu0 %v1249
        %1271 = vmatpush.bf16.msra.mxu0 %v1248
        %1272 = vmatmul.bf16.gmra.mxu0 %v1199
        %v1273 = vpop.f32.mrf.mxu0
        %v1274 = vadd.f32 0.0, %v1273
        %v1275 = vpop.f32.mrf.mxu0
        %v1276 = vadd.f32 0.0, %v1275
        %1277 = vdwg.mxu0
        %v1278 = vadd.f32 %v1091, %v1274
        %v1279 = vadd.f32 %v1092, %v1276
        %v1280 = vld [vmem:[%s481] sm:$0x1]
        %v1282 = vperm.slane %v1280, 0
        %v1284 = vadd.f32 %v1278, %v1282
        %v1285 = vadd.f32 %v1279, %v1282
        %1286 = vst.msk [vmem:[#allocation3] sm:$0xff] %vm495, %v1284
        %1287 = vst.msk [vmem:[#allocation3 + $0x8] sm:$0xff] %vm495, %v1285
        // Predicated region
        $region65: #{tpu_custom_call.1} parent=59 // pred_check
          %p1288 = pneg %p290
        $region66: #{tpu_custom_call.1} parent=59 // pred_check_branch
          %1290 = sbr.rel (%p1288) target = $region68
        $region67: #{tpu_custom_call.1} parent=59 // pred_region
          %1292 = vsyncadd [#allocation4], 0
          %s1293 = sshll.u32 [#allocation3], 4
          %s1294 = int_to_ptr.vmem [resolvable:$true] %s1293
          %s1295 = sshll.u32 %s10, 4
          %s1296 = int_to_ptr.hbm [resolvable:$true] %s1295
          %1301 = dma.vmem_to_hbm [thread:$0]  %s1294, 256, %s1296, [#allocation4], 128, 128, 8
        $region68: #{tpu_custom_call.1} parent=59 // pred_fallthru
          _
        // Predicated region
        $region69: #{tpu_custom_call.1} parent=59 // pred_check
          %p1302 = pneg %p290
        $region70: #{tpu_custom_call.1} parent=59 // pred_check_branch
          %1304 = sbr.rel (%p1302) target = $region72
        $region71: #{tpu_custom_call.1} parent=59 // pred_region
          %1306 = dma.done [#allocation4], 256
        $region72: #{tpu_custom_call.1} parent=59 // pred_fallthru
          _
      $region60: #{tpu_custom_call.1} parent=5 // pred_fallthru
        _
      %p1307 = scmp.le.s32.totalorder 2, %s17
      // Predicated region
      $region73: #{tpu_custom_call.1} parent=5 // pred_check
        %p1308 = pneg %p1307
      $region74: #{tpu_custom_call.1} parent=5 // pred_check_branch
        %1310 = sbr.rel (%p1308) target = $region76
      $region75: #{tpu_custom_call.1} parent=5 // pred_region
        %s1311 = ssub.s32 %s17, 2
      $region76: #{tpu_custom_call.1} parent=5 // pred_fallthru
        _
    $region6: #{tpu_custom_call.1} parent=1 // loop_footer
      %s21 = sadd.s32 1, %s17
    $region7: #{tpu_custom_call.1} parent=1 // loop_footer_branch
      %16 = sbr.rel target = $region3
    $region8: #{tpu_custom_call.1} parent=1 // loop_exit
      _
    %1312 = vsyncpa [#allocation4], 1
    %s1313 = scalar_lea.sflag [#allocation4], 1
    %1314 = vsyncpa %s1313, 1

</llo_original>
